<compile_context>
chip_gen: v6e
topology: v6e:2x2x1
jax: 0.10.0
libtpu: 0.0.40
codegen_flags: <defaults>
</compile_context>

<pallas_src>
import functools

import jax
import jax.numpy as jnp
from jax.experimental import pallas as pl
from jax.experimental.pallas import tpu as pltpu


def _predrnn_kernel(
    x_ref,                     # [B, tk]          f32  (K-tile of the input)
    wx_ref, bx_ref,            # [tk, 7H] bf16,  [1, 7H] f32  (xg, xi, xf, _xg, _xi, _xf, xo)
    h_ref, c_ref, m_ref,       # [B, H]           f32
    wh_ref, bh_ref,            # [H, 4H]  bf16,  [1, 4H] f32  (hg, hi, hf, ho)
    wm_ref, bm_ref,            # [H, 3H]  bf16,  [1, 3H] f32  (mg, mi, mf)
    wcd_ref, bcd_ref,          # [H, 2H]  bf16,  [1, 2H] f32  ([Wco | W11_c], [bco | b11])
    wmd_ref, bmd_ref,          # [H, 2H]  bf16,  [1, 2H] f32  ([Wmo | W11_m], [bmo | 0])
    h_out_ref, c_out_ref, m_out_ref,   # [B, H] f32
    acc_ref,                   # VMEM scratch [B, 7H] f32 (x-path accumulator)
):
    k = pl.program_id(0)

    @pl.when(k == 0)
    def _():
        acc_ref[...] = jnp.zeros_like(acc_ref)

    # Streaming K-reduction of the big x-path matmul (MXU, bf16 in / f32 acc).
    acc_ref[...] += jnp.dot(
        x_ref[...].astype(jnp.bfloat16), wx_ref[...],
        preferred_element_type=jnp.float32)

    @pl.when(k == pl.num_programs(0) - 1)
    def _():
        H = h_ref.shape[-1]
        xw = acc_ref[...] + bx_ref[...]

        h = h_ref[...]
        c = c_ref[...]
        m = m_ref[...]

        hw = jnp.dot(h.astype(jnp.bfloat16), wh_ref[...],
                     preferred_element_type=jnp.float32) + bh_ref[...]
        mw = jnp.dot(m.astype(jnp.bfloat16), wm_ref[...],
                     preferred_element_type=jnp.float32) + bm_ref[...]

        # ----- temporal (c) branch -----
        gt = jnp.tanh(xw[:, 0 * H:1 * H] + hw[:, 0 * H:1 * H])
        it = jax.nn.sigmoid(xw[:, 1 * H:2 * H] + hw[:, 1 * H:2 * H])
        ft = jax.nn.sigmoid(xw[:, 2 * H:3 * H] + hw[:, 2 * H:3 * H])
        c_t = ft * c + it * gt

        # ----- spatiotemporal (m) branch -----
        g_t = jnp.tanh(xw[:, 3 * H:4 * H] + mw[:, 0 * H:1 * H])
        i_t = jax.nn.sigmoid(xw[:, 4 * H:5 * H] + mw[:, 1 * H:2 * H])
        f_t = jax.nn.sigmoid(xw[:, 5 * H:6 * H] + mw[:, 2 * H:3 * H])
        m_t = f_t * m + i_t * g_t

        # ----- dependent matmuls, fused: c_t @ [Wco | W11_c], m_t @ [Wmo | W11_m]
        cd = jnp.dot(c_t.astype(jnp.bfloat16), wcd_ref[...],
                     preferred_element_type=jnp.float32) + bcd_ref[...]
        md = jnp.dot(m_t.astype(jnp.bfloat16), wmd_ref[...],
                     preferred_element_type=jnp.float32) + bmd_ref[...]

        # ot = sigmoid(Wxo x + Who h + Wco c_t + Wmo m_t)   (note: m_t, not m_prev)
        ot = jax.nn.sigmoid(xw[:, 6 * H:7 * H] + hw[:, 3 * H:4 * H]
                            + cd[:, :H] + md[:, :H])
        # h_t = ot * tanh(W11([c_t, m_t]))
        h_t = ot * jnp.tanh(cd[:, H:] + md[:, H:])

        h_out_ref[...] = h_t.astype(h_out_ref.dtype)
        c_out_ref[...] = c_t.astype(c_out_ref.dtype)
        m_out_ref[...] = m_t.astype(m_out_ref.dtype)


def _pick_block_k(D, max_tk=1024):
    """Largest multiple of 128 <= max_tk that evenly divides D (else full D)."""
    if D % 128 != 0:
        return D
    cand = min(max_tk - (max_tk % 128), D)
    while cand >= 128:
        if D % cand == 0:
            return cand
        cand -= 128
    return D


@functools.partial(jax.jit, static_argnames=("block_k",))
def predrnn_cell(x, h_prev, c_prev, m_prev, params, block_k=1024):
    B, D = x.shape
    H = h_prev.shape[-1]
    tk = _pick_block_k(D, block_k)
    nk = D // tk

    out_sds = jax.ShapeDtypeStruct((B, H), jnp.float32)
    const = lambda k: (0, 0)  # block never changes -> fetched once, VMEM-resident

    return pl.pallas_call(
        _predrnn_kernel,
        out_shape=(out_sds, out_sds, out_sds),
        grid_spec=pltpu.PrefetchScalarGridSpec(
            num_scalar_prefetch=0,
            grid=(nk,),
            in_specs=[
                pl.BlockSpec((B, tk), lambda k: (0, k)),        # x  (K-tiled)
                pl.BlockSpec((tk, 7 * H), lambda k: (k, 0)),    # wx (K-tiled)
                pl.BlockSpec((1, 7 * H), const),                # bx
                pl.BlockSpec((B, H), const),                    # h_prev
                pl.BlockSpec((B, H), const),                    # c_prev
                pl.BlockSpec((B, H), const),                    # m_prev
                pl.BlockSpec((H, 4 * H), const),                # wh
                pl.BlockSpec((1, 4 * H), const),                # bh
                pl.BlockSpec((H, 3 * H), const),                # wm
                pl.BlockSpec((1, 3 * H), const),                # bm
                pl.BlockSpec((H, 2 * H), const),                # wcd = [Wco | W11_c]
                pl.BlockSpec((1, 2 * H), const),                # bcd = [bco | b11]
                pl.BlockSpec((H, 2 * H), const),                # wmd = [Wmo | W11_m]
                pl.BlockSpec((1, 2 * H), const),                # bmd = [bmo | 0]
            ],
            out_specs=[
                pl.BlockSpec((B, H), const),
                pl.BlockSpec((B, H), const),
                pl.BlockSpec((B, H), const),
            ],
            scratch_shapes=[pltpu.VMEM((B, 7 * H), jnp.float32)],
        ),
        compiler_params=pltpu.CompilerParams(
            dimension_semantics=("arbitrary",),   # K is a reduction axis
            vmem_limit_bytes=48 << 20,            # v7x-safe (< 64 MiB physical)
        ),
    )(
        x,
        params["wx"], params["bx"],
        h_prev, c_prev, m_prev,
        params["wh"], params["bh"],
        params["wm"], params["bm"],
        params["wcd"], params["bcd"],
        params["wmd"], params["bmd"],
    )


def _linear_init(key, in_dim, out_dim):
    """PyTorch nn.Linear default init: U(-1/sqrt(in), 1/sqrt(in)); stored [in, out]."""
    kw, kb = jax.random.split(key)
    bound = 1.0 / jnp.sqrt(jnp.float32(in_dim))
    w = jax.random.uniform(kw, (in_dim, out_dim), jnp.float32, -bound, bound)
    b = jax.random.uniform(kb, (out_dim,), jnp.float32, -bound, bound)
    return w, b


def make_params(key, input_dim, hidden_dim):
    keys = jax.random.split(key, 17)
    H = hidden_dim
    # x-path linears in kernel gate order: xg, xi, xf, _xg, _xi, _xf, xo
    wxg, bxg = _linear_init(keys[0], input_dim, H)
    wxi, bxi = _linear_init(keys[1], input_dim, H)
    wxf, bxf = _linear_init(keys[2], input_dim, H)
    w_xg, b_xg = _linear_init(keys[3], input_dim, H)
    w_xi, b_xi = _linear_init(keys[4], input_dim, H)
    w_xf, b_xf = _linear_init(keys[5], input_dim, H)
    wxo, bxo = _linear_init(keys[6], input_dim, H)
    # h-path: hg, hi, hf, ho
    whg, bhg = _linear_init(keys[7], H, H)
    whi, bhi = _linear_init(keys[8], H, H)
    whf, bhf = _linear_init(keys[9], H, H)
    who, bho = _linear_init(keys[10], H, H)
    # m-path (on m_prev): mg, mi, mf
    wmg, bmg = _linear_init(keys[11], H, H)
    wmi, bmi = _linear_init(keys[12], H, H)
    wmf, bmf = _linear_init(keys[13], H, H)
    # dependent: Wmo (applied to new m_t), Wco (applied to new c_t), W11 ([c_t, m_t] -> H)
    wmo, bmo = _linear_init(keys[14], H, H)
    wco, bco = _linear_init(keys[15], H, H)
    w11, b11 = _linear_init(keys[16], 2 * H, H)
    w11_c = w11[:H, :]
    w11_m = w11[H:, :]

    bf16 = jnp.bfloat16
    params = {
        # weights in bf16 (HBM-bandwidth-bound kernel); biases stay f32
        "wx": jnp.concatenate([wxg, wxi, wxf, w_xg, w_xi, w_xf, wxo], axis=1).astype(bf16),
        "bx": jnp.concatenate([bxg, bxi, bxf, b_xg, b_xi, b_xf, bxo])[None, :],
        "wh": jnp.concatenate([whg, whi, whf, who], axis=1).astype(bf16),
        "bh": jnp.concatenate([bhg, bhi, bhf, bho])[None, :],
        "wm": jnp.concatenate([wmg, wmi, wmf], axis=1).astype(bf16),
        "bm": jnp.concatenate([bmg, bmi, bmf])[None, :],
        "wcd": jnp.concatenate([wco, w11_c], axis=1).astype(bf16),
        "bcd": jnp.concatenate([bco, b11])[None, :],
        "wmd": jnp.concatenate([wmo, w11_m], axis=1).astype(bf16),
        "bmd": jnp.concatenate([bmo, jnp.zeros_like(b11)])[None, :],
    }
    return params


def predrnn_cell_ref(x, h, c, m, p):
    """Pure-JAX reference (deterministic branch; same bf16-weight numerics)."""
    H = h.shape[-1]

    def mm(a, w):
        return jnp.dot(a.astype(jnp.bfloat16), w, preferred_element_type=jnp.float32)

    xw = mm(x, p["wx"]) + p["bx"]
    hw = mm(h, p["wh"]) + p["bh"]
    mw = mm(m, p["wm"]) + p["bm"]

    gt = jnp.tanh(xw[:, 0*H:1*H] + hw[:, 0*H:1*H])
    it = jax.nn.sigmoid(xw[:, 1*H:2*H] + hw[:, 1*H:2*H])
    ft = jax.nn.sigmoid(xw[:, 2*H:3*H] + hw[:, 2*H:3*H])
    c_t = ft * c + it * gt

    g_t = jnp.tanh(xw[:, 3*H:4*H] + mw[:, 0*H:1*H])
    i_t = jax.nn.sigmoid(xw[:, 4*H:5*H] + mw[:, 1*H:2*H])
    f_t = jax.nn.sigmoid(xw[:, 5*H:6*H] + mw[:, 2*H:3*H])
    m_t = f_t * m + i_t * g_t

    cd = mm(c_t, p["wcd"]) + p["bcd"]
    md = mm(m_t, p["wmd"]) + p["bmd"]
    ot = jax.nn.sigmoid(xw[:, 6*H:7*H] + hw[:, 3*H:4*H] + cd[:, :H] + md[:, :H])
    h_t = ot * jnp.tanh(cd[:, H:] + md[:, H:])
    return h_t, c_t, m_t


if __name__ == "__main__":
    # Small shapes consistent with the module (module default: input is a
    # flattened 64*64*3 image -> 12288, hidden 256).  Scaled to 16*16*3 / 128.
    B, INPUT_DIM, HIDDEN_DIM = 8, 16 * 16 * 3, 128

    key = jax.random.PRNGKey(0)
    k_params, kx, kh, kc, km = jax.random.split(key, 5)

    params = make_params(k_params, INPUT_DIM, HIDDEN_DIM)
    x = jax.random.normal(kx, (B, INPUT_DIM), jnp.float32)
    h_prev = jax.random.normal(kh, (B, HIDDEN_DIM), jnp.float32)
    c_prev = jax.random.normal(kc, (B, HIDDEN_DIM), jnp.float32)
    m_prev = jax.random.normal(km, (B, HIDDEN_DIM), jnp.float32)

    # block_k=256 -> 3 K-tiles at this small size (exercises the streaming path).
    h_t, c_t, m_t = predrnn_cell(x, h_prev, c_prev, m_prev, params, block_k=256)
    jax.block_until_ready((h_t, c_t, m_t))

    h_r, c_r, m_r = predrnn_cell_ref(x, h_prev, c_prev, m_prev, params)
    assert jnp.allclose(h_t, h_r, atol=1e-3, rtol=1e-3)
    assert jnp.allclose(c_t, c_r, atol=1e-3, rtol=1e-3)
    assert jnp.allclose(m_t, m_r, atol=1e-3, rtol=1e-3)

    print("KERNEL_OK")
</pallas_src>

<mosaic_0001>
module attributes {stable_mosaic.version = 11 : i64} {
  func.func @_predrnn_kernel(%arg0: i32, %arg1: memref<8x256xf32, #tpu.memory_space<vmem>>, %arg2: memref<256x896xbf16, #tpu.memory_space<vmem>>, %arg3: memref<1x896xf32, #tpu.memory_space<vmem>>, %arg4: memref<8x128xf32, #tpu.memory_space<vmem>>, %arg5: memref<8x128xf32, #tpu.memory_space<vmem>>, %arg6: memref<8x128xf32, #tpu.memory_space<vmem>>, %arg7: memref<128x512xbf16, #tpu.memory_space<vmem>>, %arg8: memref<1x512xf32, #tpu.memory_space<vmem>>, %arg9: memref<128x384xbf16, #tpu.memory_space<vmem>>, %arg10: memref<1x384xf32, #tpu.memory_space<vmem>>, %arg11: memref<128x256xbf16, #tpu.memory_space<vmem>>, %arg12: memref<1x256xf32, #tpu.memory_space<vmem>>, %arg13: memref<128x256xbf16, #tpu.memory_space<vmem>>, %arg14: memref<1x256xf32, #tpu.memory_space<vmem>>, %arg15: memref<8x128xf32, #tpu.memory_space<vmem>>, %arg16: memref<8x128xf32, #tpu.memory_space<vmem>>, %arg17: memref<8x128xf32, #tpu.memory_space<vmem>>, %arg18: memref<8x896xf32, #tpu.memory_space<vmem>>) attributes {dimension_semantics = [#tpu.dimension_semantics<arbitrary>], iteration_bounds = array<i64: 3>, scalar_prefetch = 0 : i64, scratch_operands = 1 : i64, tpu.core_type = #tpu.core_type<tc>, window_params = [{transform_indices = @transform_0, window_bounds = array<i64: 8, 256>}, {transform_indices = @transform_1, window_bounds = array<i64: 256, 896>}, {pipeline_mode = #tpu.pipeline_mode<synchronous>, transform_indices = @transform_2, window_bounds = array<i64: 1, 896>}, {pipeline_mode = #tpu.pipeline_mode<synchronous>, transform_indices = @transform_3, window_bounds = array<i64: 8, 128>}, {pipeline_mode = #tpu.pipeline_mode<synchronous>, transform_indices = @transform_4, window_bounds = array<i64: 8, 128>}, {pipeline_mode = #tpu.pipeline_mode<synchronous>, transform_indices = @transform_5, window_bounds = array<i64: 8, 128>}, {pipeline_mode = #tpu.pipeline_mode<synchronous>, transform_indices = @transform_6, window_bounds = array<i64: 128, 512>}, {pipeline_mode = #tpu.pipeline_mode<synchronous>, transform_indices = @transform_7, window_bounds = array<i64: 1, 512>}, {pipeline_mode = #tpu.pipeline_mode<synchronous>, transform_indices = @transform_8, window_bounds = array<i64: 128, 384>}, {pipeline_mode = #tpu.pipeline_mode<synchronous>, transform_indices = @transform_9, window_bounds = array<i64: 1, 384>}, {pipeline_mode = #tpu.pipeline_mode<synchronous>, transform_indices = @transform_10, window_bounds = array<i64: 128, 256>}, {pipeline_mode = #tpu.pipeline_mode<synchronous>, transform_indices = @transform_11, window_bounds = array<i64: 1, 256>}, {pipeline_mode = #tpu.pipeline_mode<synchronous>, transform_indices = @transform_12, window_bounds = array<i64: 128, 256>}, {pipeline_mode = #tpu.pipeline_mode<synchronous>, transform_indices = @transform_13, window_bounds = array<i64: 1, 256>}, {pipeline_mode = #tpu.pipeline_mode<synchronous>, transform_indices = @transform_14, window_bounds = array<i64: 8, 128>}, {pipeline_mode = #tpu.pipeline_mode<synchronous>, transform_indices = @transform_15, window_bounds = array<i64: 8, 128>}, {pipeline_mode = #tpu.pipeline_mode<synchronous>, transform_indices = @transform_16, window_bounds = array<i64: 8, 128>}]} {
    %c0_i32 = arith.constant 0 : i32
    %0 = arith.cmpi eq, %arg0, %c0_i32 : i32
    %1 = arith.extui %0 : i1 to i32
    %c0_i32_0 = arith.constant 0 : i32
    %2 = arith.cmpi ne, %1, %c0_i32_0 : i32
    scf.if %2 {
      %cst_9 = arith.constant 0.000000e+00 : f32
      %13 = vector.broadcast %cst_9 : f32 to vector<8x896xf32>
      %c0_10 = arith.constant 0 : index
      %c0_11 = arith.constant 0 : index
      %14 = vector.load %arg18[%c0_10, %c0_11] : memref<8x896xf32, #tpu.memory_space<vmem>>, vector<8x896xf32>
      tpu.vector_store %arg18[%c0_10, %c0_11], %13 {strides = array<i32>} : memref<8x896xf32, #tpu.memory_space<vmem>>, vector<8x896xf32>,
    } else {
    }
    %c0 = arith.constant 0 : index
    %c0_1 = arith.constant 0 : index
    %3 = vector.load %arg18[%c0, %c0_1] : memref<8x896xf32, #tpu.memory_space<vmem>>, vector<8x896xf32>
    %c0_2 = arith.constant 0 : index
    %c0_3 = arith.constant 0 : index
    %4 = vector.load %arg1[%c0_2, %c0_3] : memref<8x256xf32, #tpu.memory_space<vmem>>, vector<8x256xf32>
    %5 = arith.truncf %4 : vector<8x256xf32> to vector<8x256xbf16>
    %c0_4 = arith.constant 0 : index
    %c0_5 = arith.constant 0 : index
    %6 = vector.load %arg2[%c0_4, %c0_5] : memref<256x896xbf16, #tpu.memory_space<vmem>>, vector<256x896xbf16>
    %cst = arith.constant dense<0.000000e+00> : vector<8x896xf32>
    %7 = tpu.matmul %5, %6, %cst {dimension_numbers = #tpu.dot_dimension_numbers<[1], [0], [0], [1], [0, 0, 1, 1], [], []>} : vector<8x256xbf16>, vector<256x896xbf16>, vector<8x896xf32> -> vector<8x896xf32>
    %8 = arith.addf %3, %7 : vector<8x896xf32>
    %c0_6 = arith.constant 0 : index
    %c0_7 = arith.constant 0 : index
    %9 = vector.load %arg18[%c0_6, %c0_7] : memref<8x896xf32, #tpu.memory_space<vmem>>, vector<8x896xf32>
    tpu.vector_store %arg18[%c0_6, %c0_7], %8 {strides = array<i32>} : memref<8x896xf32, #tpu.memory_space<vmem>>, vector<8x896xf32>,
    %c2_i32 = arith.constant 2 : i32
    %10 = arith.cmpi eq, %arg0, %c2_i32 : i32
    %11 = arith.extui %10 : i1 to i32
    %c0_i32_8 = arith.constant 0 : i32
    %12 = arith.cmpi ne, %11, %c0_i32_8 : i32
    scf.if %12 {
      %c0_9 = arith.constant 0 : index
      %c0_10 = arith.constant 0 : index
      %13 = vector.load %arg18[%c0_9, %c0_10] : memref<8x896xf32, #tpu.memory_space<vmem>>, vector<8x896xf32>
      %c0_11 = arith.constant 0 : index
      %c0_12 = arith.constant 0 : index
      %14 = vector.load %arg3[%c0_11, %c0_12] : memref<1x896xf32, #tpu.memory_space<vmem>>, vector<1x896xf32>
      %15 = vector.broadcast %14 : vector<1x896xf32> to vector<8x896xf32>
      %16 = arith.addf %13, %15 : vector<8x896xf32>
      %c0_13 = arith.constant 0 : index
      %c0_14 = arith.constant 0 : index
      %17 = vector.load %arg4[%c0_13, %c0_14] : memref<8x128xf32, #tpu.memory_space<vmem>>, vector<8x128xf32>
      %c0_15 = arith.constant 0 : index
      %c0_16 = arith.constant 0 : index
      %18 = vector.load %arg5[%c0_15, %c0_16] : memref<8x128xf32, #tpu.memory_space<vmem>>, vector<8x128xf32>
      %c0_17 = arith.constant 0 : index
      %c0_18 = arith.constant 0 : index
      %19 = vector.load %arg6[%c0_17, %c0_18] : memref<8x128xf32, #tpu.memory_space<vmem>>, vector<8x128xf32>
      %20 = arith.truncf %17 : vector<8x128xf32> to vector<8x128xbf16>
      %c0_19 = arith.constant 0 : index
      %c0_20 = arith.constant 0 : index
      %21 = vector.load %arg7[%c0_19, %c0_20] : memref<128x512xbf16, #tpu.memory_space<vmem>>, vector<128x512xbf16>
      %cst_21 = arith.constant dense<0.000000e+00> : vector<8x512xf32>
      %22 = tpu.matmul %20, %21, %cst_21 {dimension_numbers = #tpu.dot_dimension_numbers<[1], [0], [0], [1], [0, 0, 1, 1], [], []>} : vector<8x128xbf16>, vector<128x512xbf16>, vector<8x512xf32> -> vector<8x512xf32>
      %c0_22 = arith.constant 0 : index
      %c0_23 = arith.constant 0 : index
      %23 = vector.load %arg8[%c0_22, %c0_23] : memref<1x512xf32, #tpu.memory_space<vmem>>, vector<1x512xf32>
      %24 = vector.broadcast %23 : vector<1x512xf32> to vector<8x512xf32>
      %25 = arith.addf %22, %24 : vector<8x512xf32>
      %26 = arith.truncf %19 : vector<8x128xf32> to vector<8x128xbf16>
      %c0_24 = arith.constant 0 : index
      %c0_25 = arith.constant 0 : index
      %27 = vector.load %arg9[%c0_24, %c0_25] : memref<128x384xbf16, #tpu.memory_space<vmem>>, vector<128x384xbf16>
      %cst_26 = arith.constant dense<0.000000e+00> : vector<8x384xf32>
      %28 = tpu.matmul %26, %27, %cst_26 {dimension_numbers = #tpu.dot_dimension_numbers<[1], [0], [0], [1], [0, 0, 1, 1], [], []>} : vector<8x128xbf16>, vector<128x384xbf16>, vector<8x384xf32> -> vector<8x384xf32>
      %c0_27 = arith.constant 0 : index
      %c0_28 = arith.constant 0 : index
      %29 = vector.load %arg10[%c0_27, %c0_28] : memref<1x384xf32, #tpu.memory_space<vmem>>, vector<1x384xf32>
      %30 = vector.broadcast %29 : vector<1x384xf32> to vector<8x384xf32>
      %31 = arith.addf %28, %30 : vector<8x384xf32>
      %32 = vector.extract_strided_slice %16 {offsets = [0, 0], sizes = [8, 128], strides = [1, 1]} : vector<8x896xf32> to vector<8x128xf32>
      %33 = vector.extract_strided_slice %25 {offsets = [0, 0], sizes = [8, 128], strides = [1, 1]} : vector<8x512xf32> to vector<8x128xf32>
      %34 = arith.addf %32, %33 : vector<8x128xf32>
      %35 = math.tanh %34 : vector<8x128xf32>
      %36 = vector.extract_strided_slice %16 {offsets = [0, 128], sizes = [8, 128], strides = [1, 1]} : vector<8x896xf32> to vector<8x128xf32>
      %37 = vector.extract_strided_slice %25 {offsets = [0, 128], sizes = [8, 128], strides = [1, 1]} : vector<8x512xf32> to vector<8x128xf32>
      %38 = arith.addf %36, %37 : vector<8x128xf32>
      %39 = arith.negf %38 : vector<8x128xf32>
      %40 = math.exp %39 : vector<8x128xf32>
      %cst_29 = arith.constant 1.000000e+00 : f32
      %41 = vector.broadcast %cst_29 : f32 to vector<8x128xf32>
      %42 = arith.addf %41, %40 : vector<8x128xf32>
      %43 = arith.divf %41, %42 : vector<8x128xf32>
      %44 = vector.extract_strided_slice %16 {offsets = [0, 256], sizes = [8, 128], strides = [1, 1]} : vector<8x896xf32> to vector<8x128xf32>
      %45 = vector.extract_strided_slice %25 {offsets = [0, 256], sizes = [8, 128], strides = [1, 1]} : vector<8x512xf32> to vector<8x128xf32>
      %46 = arith.addf %44, %45 : vector<8x128xf32>
      %47 = arith.negf %46 : vector<8x128xf32>
      %48 = math.exp %47 : vector<8x128xf32>
      %cst_30 = arith.constant 1.000000e+00 : f32
      %49 = vector.broadcast %cst_30 : f32 to vector<8x128xf32>
      %50 = arith.addf %49, %48 : vector<8x128xf32>
      %51 = arith.divf %49, %50 : vector<8x128xf32>
      %52 = arith.mulf %51, %18 : vector<8x128xf32>
      %53 = arith.mulf %43, %35 : vector<8x128xf32>
      %54 = arith.addf %52, %53 : vector<8x128xf32>
      %55 = vector.extract_strided_slice %16 {offsets = [0, 384], sizes = [8, 128], strides = [1, 1]} : vector<8x896xf32> to vector<8x128xf32>
      %56 = vector.extract_strided_slice %31 {offsets = [0, 0], sizes = [8, 128], strides = [1, 1]} : vector<8x384xf32> to vector<8x128xf32>
      %57 = arith.addf %55, %56 : vector<8x128xf32>
      %58 = math.tanh %57 : vector<8x128xf32>
      %59 = vector.extract_strided_slice %16 {offsets = [0, 512], sizes = [8, 128], strides = [1, 1]} : vector<8x896xf32> to vector<8x128xf32>
      %60 = vector.extract_strided_slice %31 {offsets = [0, 128], sizes = [8, 128], strides = [1, 1]} : vector<8x384xf32> to vector<8x128xf32>
      %61 = arith.addf %59, %60 : vector<8x128xf32>
      %62 = arith.negf %61 : vector<8x128xf32>
      %63 = math.exp %62 : vector<8x128xf32>
      %cst_31 = arith.constant 1.000000e+00 : f32
      %64 = vector.broadcast %cst_31 : f32 to vector<8x128xf32>
      %65 = arith.addf %64, %63 : vector<8x128xf32>
      %66 = arith.divf %64, %65 : vector<8x128xf32>
      %67 = vector.extract_strided_slice %16 {offsets = [0, 640], sizes = [8, 128], strides = [1, 1]} : vector<8x896xf32> to vector<8x128xf32>
      %68 = vector.extract_strided_slice %31 {offsets = [0, 256], sizes = [8, 128], strides = [1, 1]} : vector<8x384xf32> to vector<8x128xf32>
      %69 = arith.addf %67, %68 : vector<8x128xf32>
      %70 = arith.negf %69 : vector<8x128xf32>
      %71 = math.exp %70 : vector<8x128xf32>
      %cst_32 = arith.constant 1.000000e+00 : f32
      %72 = vector.broadcast %cst_32 : f32 to vector<8x128xf32>
      %73 = arith.addf %72, %71 : vector<8x128xf32>
      %74 = arith.divf %72, %73 : vector<8x128xf32>
      %75 = arith.mulf %74, %19 : vector<8x128xf32>
      %76 = arith.mulf %66, %58 : vector<8x128xf32>
      %77 = arith.addf %75, %76 : vector<8x128xf32>
      %78 = arith.truncf %54 : vector<8x128xf32> to vector<8x128xbf16>
      %c0_33 = arith.constant 0 : index
      %c0_34 = arith.constant 0 : index
      %79 = vector.load %arg11[%c0_33, %c0_34] : memref<128x256xbf16, #tpu.memory_space<vmem>>, vector<128x256xbf16>
      %cst_35 = arith.constant dense<0.000000e+00> : vector<8x256xf32>
      %80 = tpu.matmul %78, %79, %cst_35 {dimension_numbers = #tpu.dot_dimension_numbers<[1], [0], [0], [1], [0, 0, 1, 1], [], []>} : vector<8x128xbf16>, vector<128x256xbf16>, vector<8x256xf32> -> vector<8x256xf32>
      %c0_36 = arith.constant 0 : index
      %c0_37 = arith.constant 0 : index
      %81 = vector.load %arg12[%c0_36, %c0_37] : memref<1x256xf32, #tpu.memory_space<vmem>>, vector<1x256xf32>
      %82 = vector.broadcast %81 : vector<1x256xf32> to vector<8x256xf32>
      %83 = arith.addf %80, %82 : vector<8x256xf32>
      %84 = arith.truncf %77 : vector<8x128xf32> to vector<8x128xbf16>
      %c0_38 = arith.constant 0 : index
      %c0_39 = arith.constant 0 : index
      %85 = vector.load %arg13[%c0_38, %c0_39] : memref<128x256xbf16, #tpu.memory_space<vmem>>, vector<128x256xbf16>
      %cst_40 = arith.constant dense<0.000000e+00> : vector<8x256xf32>
      %86 = tpu.matmul %84, %85, %cst_40 {dimension_numbers = #tpu.dot_dimension_numbers<[1], [0], [0], [1], [0, 0, 1, 1], [], []>} : vector<8x128xbf16>, vector<128x256xbf16>, vector<8x256xf32> -> vector<8x256xf32>
      %c0_41 = arith.constant 0 : index
      %c0_42 = arith.constant 0 : index
      %87 = vector.load %arg14[%c0_41, %c0_42] : memref<1x256xf32, #tpu.memory_space<vmem>>, vector<1x256xf32>
      %88 = vector.broadcast %87 : vector<1x256xf32> to vector<8x256xf32>
      %89 = arith.addf %86, %88 : vector<8x256xf32>
      %90 = vector.extract_strided_slice %16 {offsets = [0, 768], sizes = [8, 128], strides = [1, 1]} : vector<8x896xf32> to vector<8x128xf32>
      %91 = vector.extract_strided_slice %25 {offsets = [0, 384], sizes = [8, 128], strides = [1, 1]} : vector<8x512xf32> to vector<8x128xf32>
      %92 = arith.addf %90, %91 : vector<8x128xf32>
      %93 = vector.extract_strided_slice %83 {offsets = [0, 0], sizes = [8, 128], strides = [1, 1]} : vector<8x256xf32> to vector<8x128xf32>
      %94 = arith.addf %92, %93 : vector<8x128xf32>
      %95 = vector.extract_strided_slice %89 {offsets = [0, 0], sizes = [8, 128], strides = [1, 1]} : vector<8x256xf32> to vector<8x128xf32>
      %96 = arith.addf %94, %95 : vector<8x128xf32>
      %97 = arith.negf %96 : vector<8x128xf32>
      %98 = math.exp %97 : vector<8x128xf32>
      %cst_43 = arith.constant 1.000000e+00 : f32
      %99 = vector.broadcast %cst_43 : f32 to vector<8x128xf32>
      %100 = arith.addf %99, %98 : vector<8x128xf32>
      %101 = arith.divf %99, %100 : vector<8x128xf32>
      %102 = vector.extract_strided_slice %83 {offsets = [0, 128], sizes = [8, 128], strides = [1, 1]} : vector<8x256xf32> to vector<8x128xf32>
      %103 = vector.extract_strided_slice %89 {offsets = [0, 128], sizes = [8, 128], strides = [1, 1]} : vector<8x256xf32> to vector<8x128xf32>
      %104 = arith.addf %102, %103 : vector<8x128xf32>
      %105 = math.tanh %104 : vector<8x128xf32>
      %106 = arith.mulf %101, %105 : vector<8x128xf32>
      %c0_44 = arith.constant 0 : index
      %c0_45 = arith.constant 0 : index
      %107 = vector.load %arg15[%c0_44, %c0_45] : memref<8x128xf32, #tpu.memory_space<vmem>>, vector<8x128xf32>
      tpu.vector_store %arg15[%c0_44, %c0_45], %106 {strides = array<i32>} : memref<8x128xf32, #tpu.memory_space<vmem>>, vector<8x128xf32>,
      %c0_46 = arith.constant 0 : index
      %c0_47 = arith.constant 0 : index
      %108 = vector.load %arg16[%c0_46, %c0_47] : memref<8x128xf32, #tpu.memory_space<vmem>>, vector<8x128xf32>
      tpu.vector_store %arg16[%c0_46, %c0_47], %54 {strides = array<i32>} : memref<8x128xf32, #tpu.memory_space<vmem>>, vector<8x128xf32>,
      %c0_48 = arith.constant 0 : index
      %c0_49 = arith.constant 0 : index
      %109 = vector.load %arg17[%c0_48, %c0_49] : memref<8x128xf32, #tpu.memory_space<vmem>>, vector<8x128xf32>
      tpu.vector_store %arg17[%c0_48, %c0_49], %77 {strides = array<i32>} : memref<8x128xf32, #tpu.memory_space<vmem>>, vector<8x128xf32>,
    } else {
    }
    return
  }
  func.func @transform_0(%arg0: i32) -> (i32, i32) {
    %c0_i32 = arith.constant 0 : i32
    %c0_i32_0 = arith.constant 0 : i32
    return %c0_i32, %arg0 : i32, i32
  }
  func.func @transform_1(%arg0: i32) -> (i32, i32) {
    %c0_i32 = arith.constant 0 : i32
    %c0_i32_0 = arith.constant 0 : i32
    return %arg0, %c0_i32 : i32, i32
  }
  func.func @transform_2(%arg0: i32) -> (i32, i32) {
    %c0_i32 = arith.constant 0 : i32
    %c0_i32_0 = arith.constant 0 : i32
    %c0_i32_1 = arith.constant 0 : i32
    return %c0_i32, %c0_i32_0 : i32, i32
  }
  func.func @transform_3(%arg0: i32) -> (i32, i32) {
    %c0_i32 = arith.constant 0 : i32
    %c0_i32_0 = arith.constant 0 : i32
    %c0_i32_1 = arith.constant 0 : i32
    return %c0_i32, %c0_i32_0 : i32, i32
  }
  func.func @transform_4(%arg0: i32) -> (i32, i32) {
    %c0_i32 = arith.constant 0 : i32
    %c0_i32_0 = arith.constant 0 : i32
    %c0_i32_1 = arith.constant 0 : i32
    return %c0_i32, %c0_i32_0 : i32, i32
  }
  func.func @transform_5(%arg0: i32) -> (i32, i32) {
    %c0_i32 = arith.constant 0 : i32
    %c0_i32_0 = arith.constant 0 : i32
    %c0_i32_1 = arith.constant 0 : i32
    return %c0_i32, %c0_i32_0 : i32, i32
  }
  func.func @transform_6(%arg0: i32) -> (i32, i32) {
    %c0_i32 = arith.constant 0 : i32
    %c0_i32_0 = arith.constant 0 : i32
    %c0_i32_1 = arith.constant 0 : i32
    return %c0_i32, %c0_i32_0 : i32, i32
  }
  func.func @transform_7(%arg0: i32) -> (i32, i32) {
    %c0_i32 = arith.constant 0 : i32
    %c0_i32_0 = arith.constant 0 : i32
    %c0_i32_1 = arith.constant 0 : i32
    return %c0_i32, %c0_i32_0 : i32, i32
  }
  func.func @transform_8(%arg0: i32) -> (i32, i32) {
    %c0_i32 = arith.constant 0 : i32
    %c0_i32_0 = arith.constant 0 : i32
    %c0_i32_1 = arith.constant 0 : i32
    return %c0_i32, %c0_i32_0 : i32, i32
  }
  func.func @transform_9(%arg0: i32) -> (i32, i32) {
    %c0_i32 = arith.constant 0 : i32
    %c0_i32_0 = arith.constant 0 : i32
    %c0_i32_1 = arith.constant 0 : i32
    return %c0_i32, %c0_i32_0 : i32, i32
  }
  func.func @transform_10(%arg0: i32) -> (i32, i32) {
    %c0_i32 = arith.constant 0 : i32
    %c0_i32_0 = arith.constant 0 : i32
    %c0_i32_1 = arith.constant 0 : i32
    return %c0_i32, %c0_i32_0 : i32, i32
  }
  func.func @transform_11(%arg0: i32) -> (i32, i32) {
    %c0_i32 = arith.constant 0 : i32
    %c0_i32_0 = arith.constant 0 : i32
    %c0_i32_1 = arith.constant 0 : i32
    return %c0_i32, %c0_i32_0 : i32, i32
  }
  func.func @transform_12(%arg0: i32) -> (i32, i32) {
    %c0_i32 = arith.constant 0 : i32
    %c0_i32_0 = arith.constant 0 : i32
    %c0_i32_1 = arith.constant 0 : i32
    return %c0_i32, %c0_i32_0 : i32, i32
  }
  func.func @transform_13(%arg0: i32) -> (i32, i32) {
    %c0_i32 = arith.constant 0 : i32
    %c0_i32_0 = arith.constant 0 : i32
    %c0_i32_1 = arith.constant 0 : i32
    return %c0_i32, %c0_i32_0 : i32, i32
  }
  func.func @transform_14(%arg0: i32) -> (i32, i32) {
    %c0_i32 = arith.constant 0 : i32
    %c0_i32_0 = arith.constant 0 : i32
    %c0_i32_1 = arith.constant 0 : i32
    return %c0_i32, %c0_i32_0 : i32, i32
  }
  func.func @transform_15(%arg0: i32) -> (i32, i32) {
    %c0_i32 = arith.constant 0 : i32
    %c0_i32_0 = arith.constant 0 : i32
    %c0_i32_1 = arith.constant 0 : i32
    return %c0_i32, %c0_i32_0 : i32, i32
  }
  func.func @transform_16(%arg0: i32) -> (i32, i32) {
    %c0_i32 = arith.constant 0 : i32
    %c0_i32_0 = arith.constant 0 : i32
    %c0_i32_1 = arith.constant 0 : i32
    return %c0_i32, %c0_i32_0 : i32, i32
  }
}

</mosaic_0001>

<llo_original>
// kernel: predrnn_cell.1
$region0: #{predrnn_cell.1}
  #allocation0 [shape = 'u32[]', space=smem, size = 0x4, offset = 0x4, fixed_abs, tag = 'smem constant byte address 0x4 - core index']
  #allocation1 [shape = 'u32[144,128]{1,0:T(1,128)}', space=vmem, size = 0x12000, scoped, tag = 'internal scratch']
  #allocation2 [shape = 'f32[8,896]{1,0:T(8,128)}', space=vmem, size = 0x7000, scoped, tag = 'scratch operand']
  %s0 = inlined_call_operand.hbm [shape: f32[8,768], index: 0, kind: input, shape index: {}]
  %s1 = inlined_call_operand.hbm [shape: bf16[768,896], index: 1, kind: input, shape index: {}]
  %s2 = inlined_call_operand.hbm [shape: f32[1,896], index: 2, kind: input, shape index: {}]
  %s3 = inlined_call_operand.hbm [shape: f32[8,128], index: 3, kind: input, shape index: {}]
  %s4 = inlined_call_operand.hbm [shape: f32[8,128], index: 4, kind: input, shape index: {}]
  %s5 = inlined_call_operand.hbm [shape: f32[8,128], index: 5, kind: input, shape index: {}]
  %s6 = inlined_call_operand.hbm [shape: bf16[128,512], index: 6, kind: input, shape index: {}]
  %s7 = inlined_call_operand.hbm [shape: f32[1,512], index: 7, kind: input, shape index: {}]
  %s8 = inlined_call_operand.hbm [shape: bf16[128,384], index: 8, kind: input, shape index: {}]
  %s9 = inlined_call_operand.hbm [shape: f32[1,384], index: 9, kind: input, shape index: {}]
  %s10 = inlined_call_operand.hbm [shape: bf16[128,256], index: 10, kind: input, shape index: {}]
  %s11 = inlined_call_operand.hbm [shape: f32[1,256], index: 11, kind: input, shape index: {}]
  %s12 = inlined_call_operand.hbm [shape: bf16[128,256], index: 12, kind: input, shape index: {}]
  %s13 = inlined_call_operand.hbm [shape: f32[1,256], index: 13, kind: input, shape index: {}]
  %s14 = inlined_call_operand.hbm [shape: f32[8,128], index: 14, kind: output, shape index: {0}]
  %s15 = inlined_call_operand.hbm [shape: f32[8,128], index: 15, kind: output, shape index: {1}]
  %s16 = inlined_call_operand.hbm [shape: f32[8,128], index: 16, kind: output, shape index: {2}]
  %17 = xla_tuple %s14, %s15, %s16
  %s18 = sld [smem:[#allocation0]]
  $region169: #{predrnn_cell.1} parent=0
    _
  %s20 = ssub.s32 1, %s18
  %s21 = scalar_select 0, %s20, %s18
  $region1: #{predrnn_cell.1} parent=0
    #allocation3 [shape = 'u8[16384]{0}', space=vmem, size = 0x4000, scoped, tag = 'input window, operand 0']
    #allocation4 [shape = 's32[2]{0}', space=sflag, size = 0x8, scoped, tag = 'scoped memory for predrnn_cell.1']
    #allocation5 [shape = 's32[2]{0}', space=sflag, size = 0x8, scoped, tag = 'scoped memory for predrnn_cell.1']
    #allocation6 [shape = 'u8[917504]{0}', space=vmem, size = 0xe0000, scoped, tag = 'input window, operand 1']
    #allocation7 [shape = 's32[2]{0}', space=sflag, size = 0x8, scoped, tag = 'scoped memory for predrnn_cell.1']
    #allocation8 [shape = 'u8[3584]{0}', space=vmem, size = 0x1000, scoped, tag = 'input window, operand 2, single buffered']
    #allocation9 [shape = 'u8[4096]{0}', space=vmem, size = 0x1000, scoped, tag = 'input window, operand 3, single buffered']
    #allocation10 [shape = 's32[1]{0}', space=sflag, size = 0x4, scoped, tag = 'scoped memory for predrnn_cell.1']
    #allocation11 [shape = 'u8[4096]{0}', space=vmem, size = 0x1000, scoped, tag = 'input window, operand 4, single buffered']
    #allocation12 [shape = 'u8[4096]{0}', space=vmem, size = 0x1000, scoped, tag = 'input window, operand 5, single buffered']
    #allocation13 [shape = 's32[1]{0}', space=sflag, size = 0x4, scoped, tag = 'scoped memory for predrnn_cell.1']
    #allocation14 [shape = 'u8[131072]{0}', space=vmem, size = 0x20000, scoped, tag = 'input window, operand 6, single buffered']
    #allocation15 [shape = 'u8[2048]{0}', space=vmem, size = 0x800, scoped, tag = 'input window, operand 7, single buffered']
    #allocation16 [shape = 's32[1]{0}', space=sflag, size = 0x4, scoped, tag = 'scoped memory for predrnn_cell.1']
    #allocation17 [shape = 'u8[98304]{0}', space=vmem, size = 0x18000, scoped, tag = 'input window, operand 8, single buffered']
    #allocation18 [shape = 'u8[1536]{0}', space=vmem, size = 0x800, scoped, tag = 'input window, operand 9, single buffered']
    #allocation19 [shape = 's32[1]{0}', space=sflag, size = 0x4, scoped, tag = 'scoped memory for predrnn_cell.1']
    #allocation20 [shape = 'u8[65536]{0}', space=vmem, size = 0x10000, scoped, tag = 'input window, operand 10, single buffered']
    #allocation21 [shape = 'u8[1024]{0}', space=vmem, size = 0x400, scoped, tag = 'input window, operand 11, single buffered']
    #allocation22 [shape = 's32[1]{0}', space=sflag, size = 0x4, scoped, tag = 'scoped memory for predrnn_cell.1']
    #allocation23 [shape = 'u8[65536]{0}', space=vmem, size = 0x10000, scoped, tag = 'input window, operand 12, single buffered']
    #allocation24 [shape = 'u8[1024]{0}', space=vmem, size = 0x400, scoped, tag = 'input window, operand 13, single buffered']
    #allocation25 [shape = 's32[1]{0}', space=sflag, size = 0x4, scoped, tag = 'scoped memory for predrnn_cell.1']
    #allocation26 [shape = 'u8[4096]{0}', space=vmem, size = 0x1000, scoped, tag = 'output window, operand 0, single buffered']
    #allocation27 [shape = 'u8[4096]{0}', space=vmem, size = 0x1000, scoped, tag = 'output window, operand 1, single buffered']
    #allocation28 [shape = 's32[1]{0}', space=sflag, size = 0x4, scoped, tag = 'scoped memory for predrnn_cell.1']
    #allocation29 [shape = 'u8[4096]{0}', space=vmem, size = 0x1000, scoped, tag = 'output window, operand 2, single buffered']
    %22 = vsyncpa [#allocation4], 0
    %s23 = scalar_lea.sflag [#allocation4], 1
    %24 = vsyncpa %s23, 0
    %25 = vsyncpa [#allocation7], 0
    %s26 = scalar_lea.sflag [#allocation7], 1
    %27 = vsyncpa %s26, 0
    %28 = vsyncpa [#allocation10], 0
    %29 = vsyncpa [#allocation13], 0
    %30 = vsyncpa [#allocation16], 0
    %31 = vsyncpa [#allocation19], 0
    %32 = vsyncpa [#allocation22], 0
    %33 = vsyncpa [#allocation25], 0
    %34 = vsyncpa [#allocation5], 0
    %35 = vsyncpa [#allocation28], 0
    loop: start=0, step=1, limit=5
    $region2: #{predrnn_cell.1} parent=1 // loop_pre_header
      _
    $region3: #{predrnn_cell.1} parent=1 // loop_header
      %s37 = sphi 0, %s41
      %p38 = scmp.ge.s32.totalorder %s37, 5
      %s47 = sphi 0, %s49
      %s50 = sphi 0, %s47
      %s51 = sphi 0, %s50
      %s67 = sphi 0, %s51
      %s73 = sphi 0, %s75
      %s76 = sphi 0, %s73
      %s77 = sphi 0, %s76
      %s93 = sphi 0, %s77
      %s97 = sphi 0, %s97
      %s99 = sphi 0, %s97
      %s100 = sphi 0, %s99
      %s114 = sphi 0, %s100
      %s118 = sphi 0, %s118
      %s120 = sphi 0, %s118
      %s121 = sphi 0, %s120
      %s135 = sphi 0, %s121
      %s139 = sphi 0, %s139
      %s141 = sphi 0, %s139
      %s142 = sphi 0, %s141
      %s156 = sphi 0, %s142
      %s160 = sphi 0, %s160
      %s162 = sphi 0, %s160
      %s163 = sphi 0, %s162
      %s177 = sphi 0, %s163
      %s181 = sphi 0, %s181
      %s183 = sphi 0, %s181
      %s184 = sphi 0, %s183
      %s198 = sphi 0, %s184
      %s202 = sphi 0, %s202
      %s204 = sphi 0, %s202
      %s205 = sphi 0, %s204
      %s219 = sphi 0, %s205
      %s223 = sphi 0, %s223
      %s225 = sphi 0, %s223
      %s226 = sphi 0, %s225
      %s240 = sphi 0, %s226
      %s244 = sphi 0, %s244
      %s246 = sphi 0, %s244
      %s247 = sphi 0, %s246
      %s261 = sphi 0, %s247
      %s265 = sphi 0, %s265
      %s267 = sphi 0, %s265
      %s268 = sphi 0, %s267
      %s282 = sphi 0, %s268
      %s286 = sphi 0, %s286
      %s288 = sphi 0, %s286
      %s289 = sphi 0, %s288
      %s303 = sphi 0, %s289
      %s307 = sphi 0, %s307
      %s309 = sphi 0, %s307
      %s310 = sphi 0, %s309
      %s324 = sphi 0, %s310
      %s328 = sphi 0, %s328
      %s330 = sphi 0, %s328
      %s331 = sphi 0, %s330
      %s345 = sphi 0, %s331
      %s349 = sphi 0, %s349
      %s351 = sphi 0, %s349
      %s352 = sphi 0, %s351
      %s366 = sphi 0, %s352
      %s370 = sphi 0, %s370
      %s372 = sphi 0, %s370
      %s373 = sphi 0, %s372
      %s387 = sphi 0, %s373
      %s391 = sphi 0, %s391
      %s393 = sphi 0, %s391
      %s394 = sphi 0, %s393
      %s408 = sphi 0, %s394
    $region4: #{predrnn_cell.1} parent=1 // loop_header_branch
      %40 = sbr.rel (%p38) target = $region8
    $region5: #{predrnn_cell.1} parent=1 // loop_body
      %s42 = ssub.s32 %s37, 1
      %s43 = ssub.s32 %s37, 2
      %s44 = sadd.s32 %s37, 1
      %s45 = ssub.s32 %s37, %s44
      %p46 = scmp.eq.s32.totalorder %s45, 0
      %s48 = sadd.s32 %s47, 1
      %s49 = scalar_select %p46, %s47, %s48
      %p52 = pneg %p46
      %p53 = scmp.eq.s32.totalorder %s37, 2
      %p54 = por %p52, %p53
      %p55 = scmp.ne.s32.totalorder %s47, %s50
      %p56 = scmp.eq.s32.totalorder %s37, 0
      %p57 = por %p55, %p56
      %p58 = scmp.ne.s32.totalorder %s47, %s50
      %p59 = scmp.eq.s32.totalorder %s42, 2
      %p60 = por %p58, %p59
      %p61 = scmp.ne.s32.totalorder %s50, %s51
      %p62 = scmp.eq.s32.totalorder %s42, 0
      %p63 = por %p61, %p62
      %p64 = scmp.ne.s32.totalorder %s50, %s51
      %p65 = scmp.eq.s32.totalorder %s43, 2
      %p66 = por %p64, %p65
      %p68 = scmp.ne.s32.totalorder %s51, %s67
      %p69 = scmp.eq.s32.totalorder %s43, 0
      %p70 = por %p68, %p69
      %s71 = ssub.s32 %s37, %s44
      %p72 = scmp.eq.s32.totalorder %s71, 0
      %s74 = sadd.s32 %s73, 1
      %s75 = scalar_select %p72, %s73, %s74
      %p78 = pneg %p72
      %p79 = scmp.eq.s32.totalorder %s37, 2
      %p80 = por %p78, %p79
      %p81 = scmp.ne.s32.totalorder %s73, %s76
      %p82 = scmp.eq.s32.totalorder %s37, 0
      %p83 = por %p81, %p82
      %p84 = scmp.ne.s32.totalorder %s73, %s76
      %p85 = scmp.eq.s32.totalorder %s42, 2
      %p86 = por %p84, %p85
      %p87 = scmp.ne.s32.totalorder %s76, %s77
      %p88 = scmp.eq.s32.totalorder %s42, 0
      %p89 = por %p87, %p88
      %p90 = scmp.ne.s32.totalorder %s76, %s77
      %p91 = scmp.eq.s32.totalorder %s43, 2
      %p92 = por %p90, %p91
      %p94 = scmp.ne.s32.totalorder %s77, %s93
      %p95 = scmp.eq.s32.totalorder %s43, 0
      %p96 = por %p94, %p95
      %s98 = sadd.s32 %s97, 1
      %p101 = scmp.eq.s32.totalorder %s37, 2
      %p102 = scmp.ne.s32.totalorder %s97, %s99
      %p103 = scmp.eq.s32.totalorder %s37, 0
      %p104 = por %p102, %p103
      %p105 = scmp.ne.s32.totalorder %s97, %s99
      %p106 = scmp.eq.s32.totalorder %s42, 2
      %p107 = por %p105, %p106
      %p108 = scmp.ne.s32.totalorder %s99, %s100
      %p109 = scmp.eq.s32.totalorder %s42, 0
      %p110 = por %p108, %p109
      %p111 = scmp.ne.s32.totalorder %s99, %s100
      %p112 = scmp.eq.s32.totalorder %s43, 2
      %p113 = por %p111, %p112
      %p115 = scmp.ne.s32.totalorder %s100, %s114
      %p116 = scmp.eq.s32.totalorder %s43, 0
      %p117 = por %p115, %p116
      %s119 = sadd.s32 %s118, 1
      %p122 = scmp.eq.s32.totalorder %s37, 2
      %p123 = scmp.ne.s32.totalorder %s118, %s120
      %p124 = scmp.eq.s32.totalorder %s37, 0
      %p125 = por %p123, %p124
      %p126 = scmp.ne.s32.totalorder %s118, %s120
      %p127 = scmp.eq.s32.totalorder %s42, 2
      %p128 = por %p126, %p127
      %p129 = scmp.ne.s32.totalorder %s120, %s121
      %p130 = scmp.eq.s32.totalorder %s42, 0
      %p131 = por %p129, %p130
      %p132 = scmp.ne.s32.totalorder %s120, %s121
      %p133 = scmp.eq.s32.totalorder %s43, 2
      %p134 = por %p132, %p133
      %p136 = scmp.ne.s32.totalorder %s121, %s135
      %p137 = scmp.eq.s32.totalorder %s43, 0
      %p138 = por %p136, %p137
      %s140 = sadd.s32 %s139, 1
      %p143 = scmp.eq.s32.totalorder %s37, 2
      %p144 = scmp.ne.s32.totalorder %s139, %s141
      %p145 = scmp.eq.s32.totalorder %s37, 0
      %p146 = por %p144, %p145
      %p147 = scmp.ne.s32.totalorder %s139, %s141
      %p148 = scmp.eq.s32.totalorder %s42, 2
      %p149 = por %p147, %p148
      %p150 = scmp.ne.s32.totalorder %s141, %s142
      %p151 = scmp.eq.s32.totalorder %s42, 0
      %p152 = por %p150, %p151
      %p153 = scmp.ne.s32.totalorder %s141, %s142
      %p154 = scmp.eq.s32.totalorder %s43, 2
      %p155 = por %p153, %p154
      %p157 = scmp.ne.s32.totalorder %s142, %s156
      %p158 = scmp.eq.s32.totalorder %s43, 0
      %p159 = por %p157, %p158
      %s161 = sadd.s32 %s160, 1
      %p164 = scmp.eq.s32.totalorder %s37, 2
      %p165 = scmp.ne.s32.totalorder %s160, %s162
      %p166 = scmp.eq.s32.totalorder %s37, 0
      %p167 = por %p165, %p166
      %p168 = scmp.ne.s32.totalorder %s160, %s162
      %p169 = scmp.eq.s32.totalorder %s42, 2
      %p170 = por %p168, %p169
      %p171 = scmp.ne.s32.totalorder %s162, %s163
      %p172 = scmp.eq.s32.totalorder %s42, 0
      %p173 = por %p171, %p172
      %p174 = scmp.ne.s32.totalorder %s162, %s163
      %p175 = scmp.eq.s32.totalorder %s43, 2
      %p176 = por %p174, %p175
      %p178 = scmp.ne.s32.totalorder %s163, %s177
      %p179 = scmp.eq.s32.totalorder %s43, 0
      %p180 = por %p178, %p179
      %s182 = sadd.s32 %s181, 1
      %p185 = scmp.eq.s32.totalorder %s37, 2
      %p186 = scmp.ne.s32.totalorder %s181, %s183
      %p187 = scmp.eq.s32.totalorder %s37, 0
      %p188 = por %p186, %p187
      %p189 = scmp.ne.s32.totalorder %s181, %s183
      %p190 = scmp.eq.s32.totalorder %s42, 2
      %p191 = por %p189, %p190
      %p192 = scmp.ne.s32.totalorder %s183, %s184
      %p193 = scmp.eq.s32.totalorder %s42, 0
      %p194 = por %p192, %p193
      %p195 = scmp.ne.s32.totalorder %s183, %s184
      %p196 = scmp.eq.s32.totalorder %s43, 2
      %p197 = por %p195, %p196
      %p199 = scmp.ne.s32.totalorder %s184, %s198
      %p200 = scmp.eq.s32.totalorder %s43, 0
      %p201 = por %p199, %p200
      %s203 = sadd.s32 %s202, 1
      %p206 = scmp.eq.s32.totalorder %s37, 2
      %p207 = scmp.ne.s32.totalorder %s202, %s204
      %p208 = scmp.eq.s32.totalorder %s37, 0
      %p209 = por %p207, %p208
      %p210 = scmp.ne.s32.totalorder %s202, %s204
      %p211 = scmp.eq.s32.totalorder %s42, 2
      %p212 = por %p210, %p211
      %p213 = scmp.ne.s32.totalorder %s204, %s205
      %p214 = scmp.eq.s32.totalorder %s42, 0
      %p215 = por %p213, %p214
      %p216 = scmp.ne.s32.totalorder %s204, %s205
      %p217 = scmp.eq.s32.totalorder %s43, 2
      %p218 = por %p216, %p217
      %p220 = scmp.ne.s32.totalorder %s205, %s219
      %p221 = scmp.eq.s32.totalorder %s43, 0
      %p222 = por %p220, %p221
      %s224 = sadd.s32 %s223, 1
      %p227 = scmp.eq.s32.totalorder %s37, 2
      %p228 = scmp.ne.s32.totalorder %s223, %s225
      %p229 = scmp.eq.s32.totalorder %s37, 0
      %p230 = por %p228, %p229
      %p231 = scmp.ne.s32.totalorder %s223, %s225
      %p232 = scmp.eq.s32.totalorder %s42, 2
      %p233 = por %p231, %p232
      %p234 = scmp.ne.s32.totalorder %s225, %s226
      %p235 = scmp.eq.s32.totalorder %s42, 0
      %p236 = por %p234, %p235
      %p237 = scmp.ne.s32.totalorder %s225, %s226
      %p238 = scmp.eq.s32.totalorder %s43, 2
      %p239 = por %p237, %p238
      %p241 = scmp.ne.s32.totalorder %s226, %s240
      %p242 = scmp.eq.s32.totalorder %s43, 0
      %p243 = por %p241, %p242
      %s245 = sadd.s32 %s244, 1
      %p248 = scmp.eq.s32.totalorder %s37, 2
      %p249 = scmp.ne.s32.totalorder %s244, %s246
      %p250 = scmp.eq.s32.totalorder %s37, 0
      %p251 = por %p249, %p250
      %p252 = scmp.ne.s32.totalorder %s244, %s246
      %p253 = scmp.eq.s32.totalorder %s42, 2
      %p254 = por %p252, %p253
      %p255 = scmp.ne.s32.totalorder %s246, %s247
      %p256 = scmp.eq.s32.totalorder %s42, 0
      %p257 = por %p255, %p256
      %p258 = scmp.ne.s32.totalorder %s246, %s247
      %p259 = scmp.eq.s32.totalorder %s43, 2
      %p260 = por %p258, %p259
      %p262 = scmp.ne.s32.totalorder %s247, %s261
      %p263 = scmp.eq.s32.totalorder %s43, 0
      %p264 = por %p262, %p263
      %s266 = sadd.s32 %s265, 1
      %p269 = scmp.eq.s32.totalorder %s37, 2
      %p270 = scmp.ne.s32.totalorder %s265, %s267
      %p271 = scmp.eq.s32.totalorder %s37, 0
      %p272 = por %p270, %p271
      %p273 = scmp.ne.s32.totalorder %s265, %s267
      %p274 = scmp.eq.s32.totalorder %s42, 2
      %p275 = por %p273, %p274
      %p276 = scmp.ne.s32.totalorder %s267, %s268
      %p277 = scmp.eq.s32.totalorder %s42, 0
      %p278 = por %p276, %p277
      %p279 = scmp.ne.s32.totalorder %s267, %s268
      %p280 = scmp.eq.s32.totalorder %s43, 2
      %p281 = por %p279, %p280
      %p283 = scmp.ne.s32.totalorder %s268, %s282
      %p284 = scmp.eq.s32.totalorder %s43, 0
      %p285 = por %p283, %p284
      %s287 = sadd.s32 %s286, 1
      %p290 = scmp.eq.s32.totalorder %s37, 2
      %p291 = scmp.ne.s32.totalorder %s286, %s288
      %p292 = scmp.eq.s32.totalorder %s37, 0
      %p293 = por %p291, %p292
      %p294 = scmp.ne.s32.totalorder %s286, %s288
      %p295 = scmp.eq.s32.totalorder %s42, 2
      %p296 = por %p294, %p295
      %p297 = scmp.ne.s32.totalorder %s288, %s289
      %p298 = scmp.eq.s32.totalorder %s42, 0
      %p299 = por %p297, %p298
      %p300 = scmp.ne.s32.totalorder %s288, %s289
      %p301 = scmp.eq.s32.totalorder %s43, 2
      %p302 = por %p300, %p301
      %p304 = scmp.ne.s32.totalorder %s289, %s303
      %p305 = scmp.eq.s32.totalorder %s43, 0
      %p306 = por %p304, %p305
      %s308 = sadd.s32 %s307, 1
      %p311 = scmp.eq.s32.totalorder %s37, 2
      %p312 = scmp.ne.s32.totalorder %s307, %s309
      %p313 = scmp.eq.s32.totalorder %s37, 0
      %p314 = por %p312, %p313
      %p315 = scmp.ne.s32.totalorder %s307, %s309
      %p316 = scmp.eq.s32.totalorder %s42, 2
      %p317 = por %p315, %p316
      %p318 = scmp.ne.s32.totalorder %s309, %s310
      %p319 = scmp.eq.s32.totalorder %s42, 0
      %p320 = por %p318, %p319
      %p321 = scmp.ne.s32.totalorder %s309, %s310
      %p322 = scmp.eq.s32.totalorder %s43, 2
      %p323 = por %p321, %p322
      %p325 = scmp.ne.s32.totalorder %s310, %s324
      %p326 = scmp.eq.s32.totalorder %s43, 0
      %p327 = por %p325, %p326
      %s329 = sadd.s32 %s328, 1
      %p332 = scmp.eq.s32.totalorder %s37, 2
      %p333 = scmp.ne.s32.totalorder %s328, %s330
      %p334 = scmp.eq.s32.totalorder %s37, 0
      %p335 = por %p333, %p334
      %p336 = scmp.ne.s32.totalorder %s328, %s330
      %p337 = scmp.eq.s32.totalorder %s42, 2
      %p338 = por %p336, %p337
      %p339 = scmp.ne.s32.totalorder %s330, %s331
      %p340 = scmp.eq.s32.totalorder %s42, 0
      %p341 = por %p339, %p340
      %p342 = scmp.ne.s32.totalorder %s330, %s331
      %p343 = scmp.eq.s32.totalorder %s43, 2
      %p344 = por %p342, %p343
      %p346 = scmp.ne.s32.totalorder %s331, %s345
      %p347 = scmp.eq.s32.totalorder %s43, 0
      %p348 = por %p346, %p347
      %s350 = sadd.s32 %s349, 1
      %p353 = scmp.eq.s32.totalorder %s37, 2
      %p354 = scmp.ne.s32.totalorder %s349, %s351
      %p355 = scmp.eq.s32.totalorder %s37, 0
      %p356 = por %p354, %p355
      %p357 = scmp.ne.s32.totalorder %s349, %s351
      %p358 = scmp.eq.s32.totalorder %s42, 2
      %p359 = por %p357, %p358
      %p360 = scmp.ne.s32.totalorder %s351, %s352
      %p361 = scmp.eq.s32.totalorder %s42, 0
      %p362 = por %p360, %p361
      %p363 = scmp.ne.s32.totalorder %s351, %s352
      %p364 = scmp.eq.s32.totalorder %s43, 2
      %p365 = por %p363, %p364
      %p367 = scmp.ne.s32.totalorder %s352, %s366
      %p368 = scmp.eq.s32.totalorder %s43, 0
      %p369 = por %p367, %p368
      %s371 = sadd.s32 %s370, 1
      %p374 = scmp.eq.s32.totalorder %s37, 2
      %p375 = scmp.ne.s32.totalorder %s370, %s372
      %p376 = scmp.eq.s32.totalorder %s37, 0
      %p377 = por %p375, %p376
      %p378 = scmp.ne.s32.totalorder %s370, %s372
      %p379 = scmp.eq.s32.totalorder %s42, 2
      %p380 = por %p378, %p379
      %p381 = scmp.ne.s32.totalorder %s372, %s373
      %p382 = scmp.eq.s32.totalorder %s42, 0
      %p383 = por %p381, %p382
      %p384 = scmp.ne.s32.totalorder %s372, %s373
      %p385 = scmp.eq.s32.totalorder %s43, 2
      %p386 = por %p384, %p385
      %p388 = scmp.ne.s32.totalorder %s373, %s387
      %p389 = scmp.eq.s32.totalorder %s43, 0
      %p390 = por %p388, %p389
      %s392 = sadd.s32 %s391, 1
      %p395 = scmp.eq.s32.totalorder %s37, 2
      %p396 = scmp.ne.s32.totalorder %s391, %s393
      %p397 = scmp.eq.s32.totalorder %s37, 0
      %p398 = por %p396, %p397
      %p399 = scmp.ne.s32.totalorder %s391, %s393
      %p400 = scmp.eq.s32.totalorder %s42, 2
      %p401 = por %p399, %p400
      %p402 = scmp.ne.s32.totalorder %s393, %s394
      %p403 = scmp.eq.s32.totalorder %s42, 0
      %p404 = por %p402, %p403
      %p405 = scmp.ne.s32.totalorder %s393, %s394
      %p406 = scmp.eq.s32.totalorder %s43, 2
      %p407 = por %p405, %p406
      %p409 = scmp.ne.s32.totalorder %s394, %s408
      %p410 = scmp.eq.s32.totalorder %s43, 0
      %p411 = por %p409, %p410
      %p412 = scmp.le.s32.totalorder 1, %s37
      %p413 = scmp.lt.s32.totalorder %s37, 4
      %p414 = pnand %p412, %p413
      %p415 = pneg %p414
      // Predicated region
      $region9: #{predrnn_cell.1} parent=5 // pred_check
        _
      $region10: #{predrnn_cell.1} parent=5 // pred_check_branch
        %417 = sbr.rel (%p414) target = $region12
      $region11: #{predrnn_cell.1} parent=5 // pred_region
        %s418 = ssub.s32 %s37, 1
        // Predicated region
        $region13: #{predrnn_cell.1} parent=11 // pred_check
          %p419 = pneg %p110
        $region14: #{predrnn_cell.1} parent=11 // pred_check_branch
          %421 = sbr.rel (%p419) target = $region16
        $region15: #{predrnn_cell.1} parent=11 // pred_region
          %s423 = ssub.s32 112, 112
          %424 = vsyncadd [#allocation7], %s423
          %s426 = sshll.u32 [#allocation8], 4
          %s427 = int_to_ptr.vmem [resolvable:$true] %s426
          %429 = dma.hbm_to_vmem [thread:$0]  %s2, 112, %s427, [#allocation7]
        $region16: #{predrnn_cell.1} parent=11 // pred_fallthru
          _
        // Predicated region
        $region17: #{predrnn_cell.1} parent=11 // pred_check
          %p430 = pneg %p131
        $region18: #{predrnn_cell.1} parent=11 // pred_check_branch
          %432 = sbr.rel (%p430) target = $region20
        $region19: #{predrnn_cell.1} parent=11 // pred_region
          %s434 = ssub.s32 128, 128
          %435 = vsyncadd [#allocation10], %s434
          %s437 = sshll.u32 [#allocation9], 4
          %s438 = int_to_ptr.vmem [resolvable:$true] %s437
          %440 = dma.hbm_to_vmem [thread:$0]  %s3, 128, %s438, [#allocation10]
        $region20: #{predrnn_cell.1} parent=11 // pred_fallthru
          _
        // Predicated region
        $region21: #{predrnn_cell.1} parent=11 // pred_check
          %p441 = pneg %p152
        $region22: #{predrnn_cell.1} parent=11 // pred_check_branch
          %443 = sbr.rel (%p441) target = $region24
        $region23: #{predrnn_cell.1} parent=11 // pred_region
          %s445 = ssub.s32 128, 128
          %446 = vsyncadd [#allocation10], %s445
          %s448 = sshll.u32 [#allocation11], 4
          %s449 = int_to_ptr.vmem [resolvable:$true] %s448
          %451 = dma.hbm_to_vmem [thread:$0]  %s4, 128, %s449, [#allocation10]
        $region24: #{predrnn_cell.1} parent=11 // pred_fallthru
          _
        // Predicated region
        $region25: #{predrnn_cell.1} parent=11 // pred_check
          %p452 = pneg %p173
        $region26: #{predrnn_cell.1} parent=11 // pred_check_branch
          %454 = sbr.rel (%p452) target = $region28
        $region27: #{predrnn_cell.1} parent=11 // pred_region
          %s456 = ssub.s32 128, 128
          %457 = vsyncadd [#allocation13], %s456
          %s459 = sshll.u32 [#allocation12], 4
          %s460 = int_to_ptr.vmem [resolvable:$true] %s459
          %462 = dma.hbm_to_vmem [thread:$0]  %s5, 128, %s460, [#allocation13]
        $region28: #{predrnn_cell.1} parent=11 // pred_fallthru
          _
        // Predicated region
        $region29: #{predrnn_cell.1} parent=11 // pred_check
          %p463 = pneg %p194
        $region30: #{predrnn_cell.1} parent=11 // pred_check_branch
          %465 = sbr.rel (%p463) target = $region32
        $region31: #{predrnn_cell.1} parent=11 // pred_region
          %s467 = ssub.s32 4096, 4096
          %468 = vsyncadd [#allocation13], %s467
          %s469 = sshll.u32 [#allocation14], 4
          %s470 = int_to_ptr.vmem [resolvable:$true] %s469
          %475 = dma.hbm_to_vmem [thread:$0]  %s6, 4096, %s470, [#allocation13], 256, 256, 16
        $region32: #{predrnn_cell.1} parent=11 // pred_fallthru
          _
        // Predicated region
        $region33: #{predrnn_cell.1} parent=11 // pred_check
          %p476 = pneg %p215
        $region34: #{predrnn_cell.1} parent=11 // pred_check_branch
          %478 = sbr.rel (%p476) target = $region36
        $region35: #{predrnn_cell.1} parent=11 // pred_region
          %s480 = ssub.s32 64, 64
          %481 = vsyncadd [#allocation16], %s480
          %s483 = sshll.u32 [#allocation15], 4
          %s484 = int_to_ptr.vmem [resolvable:$true] %s483
          %486 = dma.hbm_to_vmem [thread:$0]  %s7, 64, %s484, [#allocation16]
        $region36: #{predrnn_cell.1} parent=11 // pred_fallthru
          _
        // Predicated region
        $region37: #{predrnn_cell.1} parent=11 // pred_check
          %p487 = pneg %p236
        $region38: #{predrnn_cell.1} parent=11 // pred_check_branch
          %489 = sbr.rel (%p487) target = $region40
        $region39: #{predrnn_cell.1} parent=11 // pred_region
          %s491 = ssub.s32 3072, 3072
          %492 = vsyncadd [#allocation16], %s491
          %s493 = sshll.u32 [#allocation17], 4
          %s494 = int_to_ptr.vmem [resolvable:$true] %s493
          %499 = dma.hbm_to_vmem [thread:$0]  %s8, 3072, %s494, [#allocation16], 192, 192, 12
        $region40: #{predrnn_cell.1} parent=11 // pred_fallthru
          _
        // Predicated region
        $region41: #{predrnn_cell.1} parent=11 // pred_check
          %p500 = pneg %p257
        $region42: #{predrnn_cell.1} parent=11 // pred_check_branch
          %502 = sbr.rel (%p500) target = $region44
        $region43: #{predrnn_cell.1} parent=11 // pred_region
          %s504 = ssub.s32 48, 48
          %505 = vsyncadd [#allocation19], %s504
          %s507 = sshll.u32 [#allocation18], 4
          %s508 = int_to_ptr.vmem [resolvable:$true] %s507
          %510 = dma.hbm_to_vmem [thread:$0]  %s9, 48, %s508, [#allocation19]
        $region44: #{predrnn_cell.1} parent=11 // pred_fallthru
          _
        // Predicated region
        $region45: #{predrnn_cell.1} parent=11 // pred_check
          %p511 = pneg %p278
        $region46: #{predrnn_cell.1} parent=11 // pred_check_branch
          %513 = sbr.rel (%p511) target = $region48
        $region47: #{predrnn_cell.1} parent=11 // pred_region
          %s515 = ssub.s32 2048, 2048
          %516 = vsyncadd [#allocation19], %s515
          %s517 = sshll.u32 [#allocation20], 4
          %s518 = int_to_ptr.vmem [resolvable:$true] %s517
          %523 = dma.hbm_to_vmem [thread:$0]  %s10, 2048, %s518, [#allocation19], 128, 128, 8
        $region48: #{predrnn_cell.1} parent=11 // pred_fallthru
          _
        // Predicated region
        $region49: #{predrnn_cell.1} parent=11 // pred_check
          %p524 = pneg %p299
        $region50: #{predrnn_cell.1} parent=11 // pred_check_branch
          %526 = sbr.rel (%p524) target = $region52
        $region51: #{predrnn_cell.1} parent=11 // pred_region
          %s528 = ssub.s32 32, 32
          %529 = vsyncadd [#allocation22], %s528
          %s531 = sshll.u32 [#allocation21], 4
          %s532 = int_to_ptr.vmem [resolvable:$true] %s531
          %534 = dma.hbm_to_vmem [thread:$0]  %s11, 32, %s532, [#allocation22]
        $region52: #{predrnn_cell.1} parent=11 // pred_fallthru
          _
        // Predicated region
        $region53: #{predrnn_cell.1} parent=11 // pred_check
          %p535 = pneg %p320
        $region54: #{predrnn_cell.1} parent=11 // pred_check_branch
          %537 = sbr.rel (%p535) target = $region56
        $region55: #{predrnn_cell.1} parent=11 // pred_region
          %s539 = ssub.s32 2048, 2048
          %540 = vsyncadd [#allocation22], %s539
          %s541 = sshll.u32 [#allocation23], 4
          %s542 = int_to_ptr.vmem [resolvable:$true] %s541
          %547 = dma.hbm_to_vmem [thread:$0]  %s12, 2048, %s542, [#allocation22], 128, 128, 8
        $region56: #{predrnn_cell.1} parent=11 // pred_fallthru
          _
        // Predicated region
        $region57: #{predrnn_cell.1} parent=11 // pred_check
          %p548 = pneg %p341
        $region58: #{predrnn_cell.1} parent=11 // pred_check_branch
          %550 = sbr.rel (%p548) target = $region60
        $region59: #{predrnn_cell.1} parent=11 // pred_region
          %s552 = ssub.s32 32, 32
          %553 = vsyncadd [#allocation25], %s552
          %s555 = sshll.u32 [#allocation24], 4
          %s556 = int_to_ptr.vmem [resolvable:$true] %s555
          %558 = dma.hbm_to_vmem [thread:$0]  %s13, 32, %s556, [#allocation25]
        $region60: #{predrnn_cell.1} parent=11 // pred_fallthru
          _
      $region12: #{predrnn_cell.1} parent=5 // pred_fallthru
        _
      %p559 = scmp.lt.s32.totalorder %s37, 3
      // Predicated region
      $region61: #{predrnn_cell.1} parent=5 // pred_check
        %p560 = pneg %p559
      $region62: #{predrnn_cell.1} parent=5 // pred_check_branch
        %562 = sbr.rel (%p560) target = $region64
      $region63: #{predrnn_cell.1} parent=5 // pred_region
        // Predicated region
        $region65: #{predrnn_cell.1} parent=63 // pred_check
          %p563 = pneg %p57
        $region66: #{predrnn_cell.1} parent=63 // pred_check_branch
          %565 = sbr.rel (%p563) target = $region68
        $region67: #{predrnn_cell.1} parent=63 // pred_region
          %s566 = sand.u32 %s47, 1
          %s567 = scalar_lea.sflag [#allocation4], %s566
          %s568 = sand.u32 %s47, 1
          %s569 = smul.addr %s568, 16
          %s570 = scalar_lea.vmem [#allocation3], %s569
          %s571 = smul.u32 2, %s37
          %s573 = ssub.s32 256, 256
          %574 = vsyncadd %s567, %s573
          %s575 = smul.addr %s571, 128
          %s576 = scalar_lea.hbm %s0, %s575
          %s578 = sshll.u32 %s570, 4
          %s579 = int_to_ptr.vmem [resolvable:$true] %s578
          %581 = dma.hbm_to_vmem [thread:$0]  %s576, 256, %s579, %s567
        $region68: #{predrnn_cell.1} parent=63 // pred_fallthru
          _
        // Predicated region
        $region69: #{predrnn_cell.1} parent=63 // pred_check
          %p582 = pneg %p83
        $region70: #{predrnn_cell.1} parent=63 // pred_check_branch
          %584 = sbr.rel (%p582) target = $region72
        $region71: #{predrnn_cell.1} parent=63 // pred_region
          %s585 = sand.u32 %s37, 1
          %s586 = scalar_lea.sflag [#allocation7], %s585
          %s587 = sand.u32 %s73, 1
          %s588 = smul.addr %s587, 896
          %s589 = scalar_lea.vmem [#allocation6], %s588
          %s590 = smul.u32 32, %s37
          %s592 = ssub.s32 14336, 14336
          %593 = vsyncadd %s586, %s592
          %s594 = smul.addr %s590, 7
          %s595 = smul.addr %s594, 64
          %s596 = scalar_lea.hbm %s1, %s595
          %s597 = sshll.u32 %s589, 4
          %s598 = int_to_ptr.vmem [resolvable:$true] %s597
          %603 = dma.hbm_to_vmem [thread:$0]  %s596, 14336, %s598, %s586, 448, 448, 28
        $region72: #{predrnn_cell.1} parent=63 // pred_fallthru
          _
      $region64: #{predrnn_cell.1} parent=5 // pred_fallthru
        _
      %p604 = scmp.le.s32.totalorder 1, %s37
      %p605 = scmp.lt.s32.totalorder %s37, 4
      %p606 = pnand %p604, %p605
      %p607 = pneg %p606
      // Predicated region
      $region73: #{predrnn_cell.1} parent=5 // pred_check
        _
      $region74: #{predrnn_cell.1} parent=5 // pred_check_branch
        %609 = sbr.rel (%p606) target = $region76
      $region75: #{predrnn_cell.1} parent=5 // pred_region
        %s610 = ssub.s32 %s37, 1
        %s611 = sand.u32 %s50, 1
        %s612 = scalar_lea.sflag [#allocation4], %s611
        %s613 = sand.u32 %s50, 1
        %s614 = smul.addr %s613, 16
        %s615 = scalar_lea.vmem [#allocation3], %s614
        // Predicated region
        $region77: #{predrnn_cell.1} parent=75 // pred_check
          %p616 = pneg %p63
        $region78: #{predrnn_cell.1} parent=75 // pred_check_branch
          %618 = sbr.rel (%p616) target = $region80
        $region79: #{predrnn_cell.1} parent=75 // pred_region
          %619 = dma.done %s612, 256
        $region80: #{predrnn_cell.1} parent=75 // pred_fallthru
          _
        %s620 = sand.u32 %s42, 1
        %s621 = scalar_lea.sflag [#allocation7], %s620
        %s622 = sand.u32 %s76, 1
        %s623 = smul.addr %s622, 896
        %s624 = scalar_lea.vmem [#allocation6], %s623
        // Predicated region
        $region81: #{predrnn_cell.1} parent=75 // pred_check
          %p625 = pneg %p89
        $region82: #{predrnn_cell.1} parent=75 // pred_check_branch
          %627 = sbr.rel (%p625) target = $region84
        $region83: #{predrnn_cell.1} parent=75 // pred_region
          %628 = dma.done %s621, 14336
        $region84: #{predrnn_cell.1} parent=75 // pred_fallthru
          _
        // Predicated region
        $region85: #{predrnn_cell.1} parent=75 // pred_check
          %p629 = pneg %p110
        $region86: #{predrnn_cell.1} parent=75 // pred_check_branch
          %631 = sbr.rel (%p629) target = $region88
        $region87: #{predrnn_cell.1} parent=75 // pred_region
          %632 = dma.done [#allocation7], 112
        $region88: #{predrnn_cell.1} parent=75 // pred_fallthru
          _
        // Predicated region
        $region89: #{predrnn_cell.1} parent=75 // pred_check
          %p633 = pneg %p131
        $region90: #{predrnn_cell.1} parent=75 // pred_check_branch
          %635 = sbr.rel (%p633) target = $region92
        $region91: #{predrnn_cell.1} parent=75 // pred_region
          %636 = dma.done [#allocation10], 128
        $region92: #{predrnn_cell.1} parent=75 // pred_fallthru
          _
        // Predicated region
        $region93: #{predrnn_cell.1} parent=75 // pred_check
          %p637 = pneg %p152
        $region94: #{predrnn_cell.1} parent=75 // pred_check_branch
          %639 = sbr.rel (%p637) target = $region96
        $region95: #{predrnn_cell.1} parent=75 // pred_region
          %640 = dma.done [#allocation10], 128
        $region96: #{predrnn_cell.1} parent=75 // pred_fallthru
          _
        // Predicated region
        $region97: #{predrnn_cell.1} parent=75 // pred_check
          %p641 = pneg %p173
        $region98: #{predrnn_cell.1} parent=75 // pred_check_branch
          %643 = sbr.rel (%p641) target = $region100
        $region99: #{predrnn_cell.1} parent=75 // pred_region
          %644 = dma.done [#allocation13], 128
        $region100: #{predrnn_cell.1} parent=75 // pred_fallthru
          _
        // Predicated region
        $region101: #{predrnn_cell.1} parent=75 // pred_check
          %p645 = pneg %p194
        $region102: #{predrnn_cell.1} parent=75 // pred_check_branch
          %647 = sbr.rel (%p645) target = $region104
        $region103: #{predrnn_cell.1} parent=75 // pred_region
          %648 = dma.done [#allocation13], 4096
        $region104: #{predrnn_cell.1} parent=75 // pred_fallthru
          _
        // Predicated region
        $region105: #{predrnn_cell.1} parent=75 // pred_check
          %p649 = pneg %p215
        $region106: #{predrnn_cell.1} parent=75 // pred_check_branch
          %651 = sbr.rel (%p649) target = $region108
        $region107: #{predrnn_cell.1} parent=75 // pred_region
          %652 = dma.done [#allocation16], 64
        $region108: #{predrnn_cell.1} parent=75 // pred_fallthru
          _
        // Predicated region
        $region109: #{predrnn_cell.1} parent=75 // pred_check
          %p653 = pneg %p236
        $region110: #{predrnn_cell.1} parent=75 // pred_check_branch
          %655 = sbr.rel (%p653) target = $region112
        $region111: #{predrnn_cell.1} parent=75 // pred_region
          %656 = dma.done [#allocation16], 3072
        $region112: #{predrnn_cell.1} parent=75 // pred_fallthru
          _
        // Predicated region
        $region113: #{predrnn_cell.1} parent=75 // pred_check
          %p657 = pneg %p257
        $region114: #{predrnn_cell.1} parent=75 // pred_check_branch
          %659 = sbr.rel (%p657) target = $region116
        $region115: #{predrnn_cell.1} parent=75 // pred_region
          %660 = dma.done [#allocation19], 48
        $region116: #{predrnn_cell.1} parent=75 // pred_fallthru
          _
        // Predicated region
        $region117: #{predrnn_cell.1} parent=75 // pred_check
          %p661 = pneg %p278
        $region118: #{predrnn_cell.1} parent=75 // pred_check_branch
          %663 = sbr.rel (%p661) target = $region120
        $region119: #{predrnn_cell.1} parent=75 // pred_region
          %664 = dma.done [#allocation19], 2048
        $region120: #{predrnn_cell.1} parent=75 // pred_fallthru
          _
        // Predicated region
        $region121: #{predrnn_cell.1} parent=75 // pred_check
          %p665 = pneg %p299
        $region122: #{predrnn_cell.1} parent=75 // pred_check_branch
          %667 = sbr.rel (%p665) target = $region124
        $region123: #{predrnn_cell.1} parent=75 // pred_region
          %668 = dma.done [#allocation22], 32
        $region124: #{predrnn_cell.1} parent=75 // pred_fallthru
          _
        // Predicated region
        $region125: #{predrnn_cell.1} parent=75 // pred_check
          %p669 = pneg %p320
        $region126: #{predrnn_cell.1} parent=75 // pred_check_branch
          %671 = sbr.rel (%p669) target = $region128
        $region127: #{predrnn_cell.1} parent=75 // pred_region
          %672 = dma.done [#allocation22], 2048
        $region128: #{predrnn_cell.1} parent=75 // pred_fallthru
          _
        // Predicated region
        $region129: #{predrnn_cell.1} parent=75 // pred_check
          %p673 = pneg %p341
        $region130: #{predrnn_cell.1} parent=75 // pred_check_branch
          %675 = sbr.rel (%p673) target = $region132
        $region131: #{predrnn_cell.1} parent=75 // pred_region
          %676 = dma.done [#allocation25], 32
        $region132: #{predrnn_cell.1} parent=75 // pred_fallthru
          _
        %s677 = sand.u32 %s50, 1
        %s678 = scalar_lea.sflag [#allocation4], %s677
        %s679 = sand.u32 %s50, 1
        %s680 = smul.addr %s679, 16
        %s681 = scalar_lea.vmem [#allocation3], %s680
        %p682 = pneg %p63
        %p683 = pneg %p60
        %s684 = sand.u32 %s42, 1
        %s685 = scalar_lea.sflag [#allocation7], %s684
        %s686 = sand.u32 %s76, 1
        %s687 = smul.addr %s686, 896
        %s688 = scalar_lea.vmem [#allocation6], %s687
        %p689 = pneg %p89
        %p690 = pneg %p86
        %p691 = pneg %p110
        %p692 = pneg %p107
        %p693 = pneg %p131
        %p694 = pneg %p128
        %p695 = pneg %p152
        %p696 = pneg %p149
        %p697 = pneg %p173
        %p698 = pneg %p170
        %p699 = pneg %p194
        %p700 = pneg %p191
        %p701 = pneg %p215
        %p702 = pneg %p212
        %p703 = pneg %p236
        %p704 = pneg %p233
        %p705 = pneg %p257
        %p706 = pneg %p254
        %p707 = pneg %p278
        %p708 = pneg %p275
        %p709 = pneg %p299
        %p710 = pneg %p296
        %p711 = pneg %p320
        %p712 = pneg %p317
        %p713 = pneg %p341
        %p714 = pneg %p338
        %p715 = pneg %p362
        %p716 = pneg %p359
        %p717 = pneg %p383
        %p718 = pneg %p380
        %p719 = pneg %p404
        %p720 = pneg %p401
        %s721 = smul.u32 2, %s42
        %s722 = smul.u32 32, %s42
        %p724 = scmp.eq.s32.totalorder %s42, 0
        // Predicated region
        $region133: #{predrnn_cell.1} parent=75 // pred_check
          %p725 = pneg %p724
        $region134: #{predrnn_cell.1} parent=75 // pred_check_branch
          %727 = sbr.rel (%p725) target = $region136
        $region135: #{predrnn_cell.1} parent=75 // pred_region
          %728 = vst [vmem:[#allocation2] sm:$0xff] 0.0
          %729 = vst [vmem:[#allocation2 + $0x8] sm:$0xff] 0.0
          %730 = vst [vmem:[#allocation2 + $0x10] sm:$0xff] 0.0
          %731 = vst [vmem:[#allocation2 + $0x18] sm:$0xff] 0.0
          %732 = vst [vmem:[#allocation2 + $0x20] sm:$0xff] 0.0
          %733 = vst [vmem:[#allocation2 + $0x28] sm:$0xff] 0.0
          %734 = vst [vmem:[#allocation2 + $0x30] sm:$0xff] 0.0
        $region136: #{predrnn_cell.1} parent=75 // pred_fallthru
          _
        %v735 = vld [vmem:[#allocation2] sm:$0xff]
        %v736 = vld [vmem:[#allocation2 + $0x8] sm:$0xff]
        %v737 = vld [vmem:[#allocation2 + $0x10] sm:$0xff]
        %v738 = vld [vmem:[#allocation2 + $0x18] sm:$0xff]
        %v739 = vld [vmem:[#allocation2 + $0x20] sm:$0xff]
        %v740 = vld [vmem:[#allocation2 + $0x28] sm:$0xff]
        %v741 = vld [vmem:[#allocation2 + $0x30] sm:$0xff]
        %v742 = vld [vmem:[%s615] sm:$0xff]
        %v743 = vld [vmem:[%s615 + $0x8] sm:$0xff]
        %v744 = vpack.c.bf16 %v742, %v742
        %v745 = vpack.c.bf16 %v743, %v743
        %v746 = vld [vmem:[%s624] sm:$0xff]
        %v747 = vld [vmem:[%s624 + $0x8] sm:$0xff]
        %v748 = vld [vmem:[%s624 + $0x10] sm:$0xff]
        %v749 = vld [vmem:[%s624 + $0x18] sm:$0xf]
        %v750 = vld [vmem:[%s624 + $0x1c] sm:$0xff]
        %v751 = vld [vmem:[%s624 + $0x24] sm:$0xff]
        %v752 = vld [vmem:[%s624 + $0x2c] sm:$0xff]
        %v753 = vld [vmem:[%s624 + $0x34] sm:$0xf]
        %v754 = vld [vmem:[%s624 + $0x38] sm:$0xff]
        %v755 = vld [vmem:[%s624 + $0x40] sm:$0xff]
        %v756 = vld [vmem:[%s624 + $0x48] sm:$0xff]
        %v757 = vld [vmem:[%s624 + $0x50] sm:$0xf]
        %v758 = vld [vmem:[%s624 + $0x54] sm:$0xff]
        %v759 = vld [vmem:[%s624 + $0x5c] sm:$0xff]
        %v760 = vld [vmem:[%s624 + $0x64] sm:$0xff]
        %v761 = vld [vmem:[%s624 + $0x6c] sm:$0xf]
        %v762 = vld [vmem:[%s624 + $0x70] sm:$0xff]
        %v763 = vld [vmem:[%s624 + $0x78] sm:$0xff]
        %v764 = vld [vmem:[%s624 + $0x80] sm:$0xff]
        %v765 = vld [vmem:[%s624 + $0x88] sm:$0xf]
        %v766 = vld [vmem:[%s624 + $0x8c] sm:$0xff]
        %v767 = vld [vmem:[%s624 + $0x94] sm:$0xff]
        %v768 = vld [vmem:[%s624 + $0x9c] sm:$0xff]
        %v769 = vld [vmem:[%s624 + $0xa4] sm:$0xf]
        %v770 = vld [vmem:[%s624 + $0xa8] sm:$0xff]
        %v771 = vld [vmem:[%s624 + $0xb0] sm:$0xff]
        %v772 = vld [vmem:[%s624 + $0xb8] sm:$0xff]
        %v773 = vld [vmem:[%s624 + $0xc0] sm:$0xf]
        %v774 = vld [vmem:[%s624 + $0xc4] sm:$0xff]
        %v775 = vld [vmem:[%s624 + $0xcc] sm:$0xff]
        %v776 = vld [vmem:[%s624 + $0xd4] sm:$0xff]
        %v777 = vld [vmem:[%s624 + $0xdc] sm:$0xf]
        %v778 = vld [vmem:[%s624 + $0xe0] sm:$0xff]
        %v779 = vld [vmem:[%s624 + $0xe8] sm:$0xff]
        %v780 = vld [vmem:[%s624 + $0xf0] sm:$0xff]
        %v781 = vld [vmem:[%s624 + $0xf8] sm:$0xf]
        %v782 = vld [vmem:[%s624 + $0xfc] sm:$0xff]
        %v783 = vld [vmem:[%s624 + $0x104] sm:$0xff]
        %v784 = vld [vmem:[%s624 + $0x10c] sm:$0xff]
        %v785 = vld [vmem:[%s624 + $0x114] sm:$0xf]
        %v786 = vld [vmem:[%s624 + $0x118] sm:$0xff]
        %v787 = vld [vmem:[%s624 + $0x120] sm:$0xff]
        %v788 = vld [vmem:[%s624 + $0x128] sm:$0xff]
        %v789 = vld [vmem:[%s624 + $0x130] sm:$0xf]
        %v790 = vld [vmem:[%s624 + $0x134] sm:$0xff]
        %v791 = vld [vmem:[%s624 + $0x13c] sm:$0xff]
        %v792 = vld [vmem:[%s624 + $0x144] sm:$0xff]
        %v793 = vld [vmem:[%s624 + $0x14c] sm:$0xf]
        %v794 = vld [vmem:[%s624 + $0x150] sm:$0xff]
        %v795 = vld [vmem:[%s624 + $0x158] sm:$0xff]
        %v796 = vld [vmem:[%s624 + $0x160] sm:$0xff]
        %v797 = vld [vmem:[%s624 + $0x168] sm:$0xf]
        %v798 = vld [vmem:[%s624 + $0x16c] sm:$0xff]
        %v799 = vld [vmem:[%s624 + $0x174] sm:$0xff]
        %v800 = vld [vmem:[%s624 + $0x17c] sm:$0xff]
        %v801 = vld [vmem:[%s624 + $0x184] sm:$0xf]
        %v802 = vld [vmem:[%s624 + $0x188] sm:$0xff]
        %v803 = vld [vmem:[%s624 + $0x190] sm:$0xff]
        %v804 = vld [vmem:[%s624 + $0x198] sm:$0xff]
        %v805 = vld [vmem:[%s624 + $0x1a0] sm:$0xf]
        %v806 = vld [vmem:[%s624 + $0x1a4] sm:$0xff]
        %v807 = vld [vmem:[%s624 + $0x1ac] sm:$0xff]
        %v808 = vld [vmem:[%s624 + $0x1b4] sm:$0xff]
        %v809 = vld [vmem:[%s624 + $0x1bc] sm:$0xf]
        %v810 = vld [vmem:[%s624 + $0x1c0] sm:$0xff]
        %v811 = vld [vmem:[%s624 + $0x1c8] sm:$0xff]
        %v812 = vld [vmem:[%s624 + $0x1d0] sm:$0xff]
        %v813 = vld [vmem:[%s624 + $0x1d8] sm:$0xf]
        %v814 = vld [vmem:[%s624 + $0x1dc] sm:$0xff]
        %v815 = vld [vmem:[%s624 + $0x1e4] sm:$0xff]
        %v816 = vld [vmem:[%s624 + $0x1ec] sm:$0xff]
        %v817 = vld [vmem:[%s624 + $0x1f4] sm:$0xf]
        %v818 = vld [vmem:[%s624 + $0x1f8] sm:$0xff]
        %v819 = vld [vmem:[%s624 + $0x200] sm:$0xff]
        %v820 = vld [vmem:[%s624 + $0x208] sm:$0xff]
        %v821 = vld [vmem:[%s624 + $0x210] sm:$0xf]
        %v822 = vld [vmem:[%s624 + $0x214] sm:$0xff]
        %v823 = vld [vmem:[%s624 + $0x21c] sm:$0xff]
        %v824 = vld [vmem:[%s624 + $0x224] sm:$0xff]
        %v825 = vld [vmem:[%s624 + $0x22c] sm:$0xf]
        %v826 = vld [vmem:[%s624 + $0x230] sm:$0xff]
        %v827 = vld [vmem:[%s624 + $0x238] sm:$0xff]
        %v828 = vld [vmem:[%s624 + $0x240] sm:$0xff]
        %v829 = vld [vmem:[%s624 + $0x248] sm:$0xf]
        %v830 = vld [vmem:[%s624 + $0x24c] sm:$0xff]
        %v831 = vld [vmem:[%s624 + $0x254] sm:$0xff]
        %v832 = vld [vmem:[%s624 + $0x25c] sm:$0xff]
        %v833 = vld [vmem:[%s624 + $0x264] sm:$0xf]
        %v834 = vld [vmem:[%s624 + $0x268] sm:$0xff]
        %v835 = vld [vmem:[%s624 + $0x270] sm:$0xff]
        %v836 = vld [vmem:[%s624 + $0x278] sm:$0xff]
        %v837 = vld [vmem:[%s624 + $0x280] sm:$0xf]
        %v838 = vld [vmem:[%s624 + $0x284] sm:$0xff]
        %v839 = vld [vmem:[%s624 + $0x28c] sm:$0xff]
        %v840 = vld [vmem:[%s624 + $0x294] sm:$0xff]
        %v841 = vld [vmem:[%s624 + $0x29c] sm:$0xf]
        %v842 = vld [vmem:[%s624 + $0x2a0] sm:$0xff]
        %v843 = vld [vmem:[%s624 + $0x2a8] sm:$0xff]
        %v844 = vld [vmem:[%s624 + $0x2b0] sm:$0xff]
        %v845 = vld [vmem:[%s624 + $0x2b8] sm:$0xf]
        %v846 = vld [vmem:[%s624 + $0x2bc] sm:$0xff]
        %v847 = vld [vmem:[%s624 + $0x2c4] sm:$0xff]
        %v848 = vld [vmem:[%s624 + $0x2cc] sm:$0xff]
        %v849 = vld [vmem:[%s624 + $0x2d4] sm:$0xf]
        %v850 = vld [vmem:[%s624 + $0x2d8] sm:$0xff]
        %v851 = vld [vmem:[%s624 + $0x2e0] sm:$0xff]
        %v852 = vld [vmem:[%s624 + $0x2e8] sm:$0xff]
        %v853 = vld [vmem:[%s624 + $0x2f0] sm:$0xf]
        %v854 = vld [vmem:[%s624 + $0x2f4] sm:$0xff]
        %v855 = vld [vmem:[%s624 + $0x2fc] sm:$0xff]
        %v856 = vld [vmem:[%s624 + $0x304] sm:$0xff]
        %v857 = vld [vmem:[%s624 + $0x30c] sm:$0xf]
        %v858 = vld [vmem:[%s624 + $0x310] sm:$0xff]
        %v859 = vld [vmem:[%s624 + $0x318] sm:$0xff]
        %v860 = vld [vmem:[%s624 + $0x320] sm:$0xff]
        %v861 = vld [vmem:[%s624 + $0x328] sm:$0xf]
        %v862 = vld [vmem:[%s624 + $0x32c] sm:$0xff]
        %v863 = vld [vmem:[%s624 + $0x334] sm:$0xff]
        %v864 = vld [vmem:[%s624 + $0x33c] sm:$0xff]
        %v865 = vld [vmem:[%s624 + $0x344] sm:$0xf]
        %v866 = vld [vmem:[%s624 + $0x348] sm:$0xff]
        %v867 = vld [vmem:[%s624 + $0x350] sm:$0xff]
        %v868 = vld [vmem:[%s624 + $0x358] sm:$0xff]
        %v869 = vld [vmem:[%s624 + $0x360] sm:$0xf]
        %v870 = vld [vmem:[%s624 + $0x364] sm:$0xff]
        %v871 = vld [vmem:[%s624 + $0x36c] sm:$0xff]
        %v872 = vld [vmem:[%s624 + $0x374] sm:$0xff]
        %v873 = vld [vmem:[%s624 + $0x37c] sm:$0xf]
        %v1002 = vunpack.c.l.b16 %v746
        %v1003 = vunpack.c.h.b16 %v746
        %v1004 = vunpack.c.l.b16 %v747
        %v1005 = vunpack.c.h.b16 %v747
        %v1006 = vunpack.c.l.b16 %v748
        %v1007 = vunpack.c.h.b16 %v748
        %v1008 = vunpack.c.l.b16 %v749
        %v1009 = vunpack.c.l.b16 %v750
        %v1010 = vunpack.c.h.b16 %v750
        %v1011 = vunpack.c.l.b16 %v751
        %v1012 = vunpack.c.h.b16 %v751
        %v1013 = vunpack.c.l.b16 %v752
        %v1014 = vunpack.c.h.b16 %v752
        %v1015 = vunpack.c.l.b16 %v753
        %v1016 = vunpack.c.l.b16 %v754
        %v1017 = vunpack.c.h.b16 %v754
        %v1018 = vunpack.c.l.b16 %v755
        %v1019 = vunpack.c.h.b16 %v755
        %v1020 = vunpack.c.l.b16 %v756
        %v1021 = vunpack.c.h.b16 %v756
        %v1022 = vunpack.c.l.b16 %v757
        %v1023 = vunpack.c.l.b16 %v758
        %v1024 = vunpack.c.h.b16 %v758
        %v1025 = vunpack.c.l.b16 %v759
        %v1026 = vunpack.c.h.b16 %v759
        %v1027 = vunpack.c.l.b16 %v760
        %v1028 = vunpack.c.h.b16 %v760
        %v1029 = vunpack.c.l.b16 %v761
        %v1030 = vunpack.c.l.b16 %v762
        %v1031 = vunpack.c.h.b16 %v762
        %v1032 = vunpack.c.l.b16 %v763
        %v1033 = vunpack.c.h.b16 %v763
        %v1034 = vunpack.c.l.b16 %v764
        %v1035 = vunpack.c.h.b16 %v764
        %v1036 = vunpack.c.l.b16 %v765
        %v1037 = vunpack.c.l.b16 %v766
        %v1038 = vunpack.c.h.b16 %v766
        %v1039 = vunpack.c.l.b16 %v767
        %v1040 = vunpack.c.h.b16 %v767
        %v1041 = vunpack.c.l.b16 %v768
        %v1042 = vunpack.c.h.b16 %v768
        %v1043 = vunpack.c.l.b16 %v769
        %v1044 = vunpack.c.l.b16 %v770
        %v1045 = vunpack.c.h.b16 %v770
        %v1046 = vunpack.c.l.b16 %v771
        %v1047 = vunpack.c.h.b16 %v771
        %v1048 = vunpack.c.l.b16 %v772
        %v1049 = vunpack.c.h.b16 %v772
        %v1050 = vunpack.c.l.b16 %v773
        %v1051 = vunpack.c.l.b16 %v774
        %v1052 = vunpack.c.h.b16 %v774
        %v1053 = vunpack.c.l.b16 %v775
        %v1054 = vunpack.c.h.b16 %v775
        %v1055 = vunpack.c.l.b16 %v776
        %v1056 = vunpack.c.h.b16 %v776
        %v1057 = vunpack.c.l.b16 %v777
        %v1058 = vunpack.c.l.b16 %v778
        %v1059 = vunpack.c.h.b16 %v778
        %v1060 = vunpack.c.l.b16 %v779
        %v1061 = vunpack.c.h.b16 %v779
        %v1062 = vunpack.c.l.b16 %v780
        %v1063 = vunpack.c.h.b16 %v780
        %v1064 = vunpack.c.l.b16 %v781
        %v1065 = vunpack.c.l.b16 %v782
        %v1066 = vunpack.c.h.b16 %v782
        %v1067 = vunpack.c.l.b16 %v783
        %v1068 = vunpack.c.h.b16 %v783
        %v1069 = vunpack.c.l.b16 %v784
        %v1070 = vunpack.c.h.b16 %v784
        %v1071 = vunpack.c.l.b16 %v785
        %v1072 = vunpack.c.l.b16 %v786
        %v1073 = vunpack.c.h.b16 %v786
        %v1074 = vunpack.c.l.b16 %v787
        %v1075 = vunpack.c.h.b16 %v787
        %v1076 = vunpack.c.l.b16 %v788
        %v1077 = vunpack.c.h.b16 %v788
        %v1078 = vunpack.c.l.b16 %v789
        %v1079 = vunpack.c.l.b16 %v790
        %v1080 = vunpack.c.h.b16 %v790
        %v1081 = vunpack.c.l.b16 %v791
        %v1082 = vunpack.c.h.b16 %v791
        %v1083 = vunpack.c.l.b16 %v792
        %v1084 = vunpack.c.h.b16 %v792
        %v1085 = vunpack.c.l.b16 %v793
        %v1086 = vunpack.c.l.b16 %v794
        %v1087 = vunpack.c.h.b16 %v794
        %v1088 = vunpack.c.l.b16 %v795
        %v1089 = vunpack.c.h.b16 %v795
        %v1090 = vunpack.c.l.b16 %v796
        %v1091 = vunpack.c.h.b16 %v796
        %v1092 = vunpack.c.l.b16 %v797
        %v1093 = vunpack.c.l.b16 %v798
        %v1094 = vunpack.c.h.b16 %v798
        %v1095 = vunpack.c.l.b16 %v799
        %v1096 = vunpack.c.h.b16 %v799
        %v1097 = vunpack.c.l.b16 %v800
        %v1098 = vunpack.c.h.b16 %v800
        %v1099 = vunpack.c.l.b16 %v801
        %v1100 = vunpack.c.l.b16 %v802
        %v1101 = vunpack.c.h.b16 %v802
        %v1102 = vunpack.c.l.b16 %v803
        %v1103 = vunpack.c.h.b16 %v803
        %v1104 = vunpack.c.l.b16 %v804
        %v1105 = vunpack.c.h.b16 %v804
        %v1106 = vunpack.c.l.b16 %v805
        %v1107 = vunpack.c.l.b16 %v806
        %v1108 = vunpack.c.h.b16 %v806
        %v1109 = vunpack.c.l.b16 %v807
        %v1110 = vunpack.c.h.b16 %v807
        %v1111 = vunpack.c.l.b16 %v808
        %v1112 = vunpack.c.h.b16 %v808
        %v1113 = vunpack.c.l.b16 %v809
        %v1114 = vunpack.c.l.b16 %v810
        %v1115 = vunpack.c.h.b16 %v810
        %v1116 = vunpack.c.l.b16 %v811
        %v1117 = vunpack.c.h.b16 %v811
        %v1118 = vunpack.c.l.b16 %v812
        %v1119 = vunpack.c.h.b16 %v812
        %v1120 = vunpack.c.l.b16 %v813
        %v1121 = vunpack.c.l.b16 %v814
        %v1122 = vunpack.c.h.b16 %v814
        %v1123 = vunpack.c.l.b16 %v815
        %v1124 = vunpack.c.h.b16 %v815
        %v1125 = vunpack.c.l.b16 %v816
        %v1126 = vunpack.c.h.b16 %v816
        %v1127 = vunpack.c.l.b16 %v817
        %v1128 = vunpack.c.l.b16 %v818
        %v1129 = vunpack.c.h.b16 %v818
        %v1130 = vunpack.c.l.b16 %v819
        %v1131 = vunpack.c.h.b16 %v819
        %v1132 = vunpack.c.l.b16 %v820
        %v1133 = vunpack.c.h.b16 %v820
        %v1134 = vunpack.c.l.b16 %v821
        %v1135 = vunpack.c.l.b16 %v822
        %v1136 = vunpack.c.h.b16 %v822
        %v1137 = vunpack.c.l.b16 %v823
        %v1138 = vunpack.c.h.b16 %v823
        %v1139 = vunpack.c.l.b16 %v824
        %v1140 = vunpack.c.h.b16 %v824
        %v1141 = vunpack.c.l.b16 %v825
        %v1142 = vunpack.c.l.b16 %v826
        %v1143 = vunpack.c.h.b16 %v826
        %v1144 = vunpack.c.l.b16 %v827
        %v1145 = vunpack.c.h.b16 %v827
        %v1146 = vunpack.c.l.b16 %v828
        %v1147 = vunpack.c.h.b16 %v828
        %v1148 = vunpack.c.l.b16 %v829
        %v1149 = vunpack.c.l.b16 %v830
        %v1150 = vunpack.c.h.b16 %v830
        %v1151 = vunpack.c.l.b16 %v831
        %v1152 = vunpack.c.h.b16 %v831
        %v1153 = vunpack.c.l.b16 %v832
        %v1154 = vunpack.c.h.b16 %v832
        %v1155 = vunpack.c.l.b16 %v833
        %v1156 = vunpack.c.l.b16 %v834
        %v1157 = vunpack.c.h.b16 %v834
        %v1158 = vunpack.c.l.b16 %v835
        %v1159 = vunpack.c.h.b16 %v835
        %v1160 = vunpack.c.l.b16 %v836
        %v1161 = vunpack.c.h.b16 %v836
        %v1162 = vunpack.c.l.b16 %v837
        %v1163 = vunpack.c.l.b16 %v838
        %v1164 = vunpack.c.h.b16 %v838
        %v1165 = vunpack.c.l.b16 %v839
        %v1166 = vunpack.c.h.b16 %v839
        %v1167 = vunpack.c.l.b16 %v840
        %v1168 = vunpack.c.h.b16 %v840
        %v1169 = vunpack.c.l.b16 %v841
        %v1170 = vunpack.c.l.b16 %v842
        %v1171 = vunpack.c.h.b16 %v842
        %v1172 = vunpack.c.l.b16 %v843
        %v1173 = vunpack.c.h.b16 %v843
        %v1174 = vunpack.c.l.b16 %v844
        %v1175 = vunpack.c.h.b16 %v844
        %v1176 = vunpack.c.l.b16 %v845
        %v1177 = vunpack.c.l.b16 %v846
        %v1178 = vunpack.c.h.b16 %v846
        %v1179 = vunpack.c.l.b16 %v847
        %v1180 = vunpack.c.h.b16 %v847
        %v1181 = vunpack.c.l.b16 %v848
        %v1182 = vunpack.c.h.b16 %v848
        %v1183 = vunpack.c.l.b16 %v849
        %v1184 = vunpack.c.l.b16 %v850
        %v1185 = vunpack.c.h.b16 %v850
        %v1186 = vunpack.c.l.b16 %v851
        %v1187 = vunpack.c.h.b16 %v851
        %v1188 = vunpack.c.l.b16 %v852
        %v1189 = vunpack.c.h.b16 %v852
        %v1190 = vunpack.c.l.b16 %v853
        %v1191 = vunpack.c.l.b16 %v854
        %v1192 = vunpack.c.h.b16 %v854
        %v1193 = vunpack.c.l.b16 %v855
        %v1194 = vunpack.c.h.b16 %v855
        %v1195 = vunpack.c.l.b16 %v856
        %v1196 = vunpack.c.h.b16 %v856
        %v1197 = vunpack.c.l.b16 %v857
        %v1198 = vunpack.c.l.b16 %v858
        %v1199 = vunpack.c.h.b16 %v858
        %v1200 = vunpack.c.l.b16 %v859
        %v1201 = vunpack.c.h.b16 %v859
        %v1202 = vunpack.c.l.b16 %v860
        %v1203 = vunpack.c.h.b16 %v860
        %v1204 = vunpack.c.l.b16 %v861
        %v1205 = vunpack.c.l.b16 %v862
        %v1206 = vunpack.c.h.b16 %v862
        %v1207 = vunpack.c.l.b16 %v863
        %v1208 = vunpack.c.h.b16 %v863
        %v1209 = vunpack.c.l.b16 %v864
        %v1210 = vunpack.c.h.b16 %v864
        %v1211 = vunpack.c.l.b16 %v865
        %v1212 = vunpack.c.l.b16 %v866
        %v1213 = vunpack.c.h.b16 %v866
        %v1214 = vunpack.c.l.b16 %v867
        %v1215 = vunpack.c.h.b16 %v867
        %v1216 = vunpack.c.l.b16 %v868
        %v1217 = vunpack.c.h.b16 %v868
        %v1218 = vunpack.c.l.b16 %v869
        %v1219 = vunpack.c.l.b16 %v870
        %v1220 = vunpack.c.h.b16 %v870
        %v1221 = vunpack.c.l.b16 %v871
        %v1222 = vunpack.c.h.b16 %v871
        %v1223 = vunpack.c.l.b16 %v872
        %v1224 = vunpack.c.h.b16 %v872
        %v1225 = vunpack.c.l.b16 %v873
        %v1226 = vpack.c.b16 %v1009, %v1002
        %v1227 = vpack.c.b16 %v1010, %v1003
        %v1228 = vpack.c.b16 %v1011, %v1004
        %v1229 = vpack.c.b16 %v1012, %v1005
        %v1230 = vpack.c.b16 %v1013, %v1006
        %v1231 = vpack.c.b16 %v1014, %v1007
        %v1232 = vpack.c.b16 %v1015, %v1008
        %v1233 = vpack.c.b16 %v1023, %v1016
        %v1234 = vpack.c.b16 %v1024, %v1017
        %v1235 = vpack.c.b16 %v1025, %v1018
        %v1236 = vpack.c.b16 %v1026, %v1019
        %v1237 = vpack.c.b16 %v1027, %v1020
        %v1238 = vpack.c.b16 %v1028, %v1021
        %v1239 = vpack.c.b16 %v1029, %v1022
        %v1240 = vpack.c.b16 %v1037, %v1030
        %v1241 = vpack.c.b16 %v1038, %v1031
        %v1242 = vpack.c.b16 %v1039, %v1032
        %v1243 = vpack.c.b16 %v1040, %v1033
        %v1244 = vpack.c.b16 %v1041, %v1034
        %v1245 = vpack.c.b16 %v1042, %v1035
        %v1246 = vpack.c.b16 %v1043, %v1036
        %v1247 = vpack.c.b16 %v1051, %v1044
        %v1248 = vpack.c.b16 %v1052, %v1045
        %v1249 = vpack.c.b16 %v1053, %v1046
        %v1250 = vpack.c.b16 %v1054, %v1047
        %v1251 = vpack.c.b16 %v1055, %v1048
        %v1252 = vpack.c.b16 %v1056, %v1049
        %v1253 = vpack.c.b16 %v1057, %v1050
        %v1254 = vpack.c.b16 %v1065, %v1058
        %v1255 = vpack.c.b16 %v1066, %v1059
        %v1256 = vpack.c.b16 %v1067, %v1060
        %v1257 = vpack.c.b16 %v1068, %v1061
        %v1258 = vpack.c.b16 %v1069, %v1062
        %v1259 = vpack.c.b16 %v1070, %v1063
        %v1260 = vpack.c.b16 %v1071, %v1064
        %v1261 = vpack.c.b16 %v1079, %v1072
        %v1262 = vpack.c.b16 %v1080, %v1073
        %v1263 = vpack.c.b16 %v1081, %v1074
        %v1264 = vpack.c.b16 %v1082, %v1075
        %v1265 = vpack.c.b16 %v1083, %v1076
        %v1266 = vpack.c.b16 %v1084, %v1077
        %v1267 = vpack.c.b16 %v1085, %v1078
        %v1268 = vpack.c.b16 %v1093, %v1086
        %v1269 = vpack.c.b16 %v1094, %v1087
        %v1270 = vpack.c.b16 %v1095, %v1088
        %v1271 = vpack.c.b16 %v1096, %v1089
        %v1272 = vpack.c.b16 %v1097, %v1090
        %v1273 = vpack.c.b16 %v1098, %v1091
        %v1274 = vpack.c.b16 %v1099, %v1092
        %v1275 = vpack.c.b16 %v1107, %v1100
        %v1276 = vpack.c.b16 %v1108, %v1101
        %v1277 = vpack.c.b16 %v1109, %v1102
        %v1278 = vpack.c.b16 %v1110, %v1103
        %v1279 = vpack.c.b16 %v1111, %v1104
        %v1280 = vpack.c.b16 %v1112, %v1105
        %v1281 = vpack.c.b16 %v1113, %v1106
        %v1282 = vpack.c.b16 %v1121, %v1114
        %v1283 = vpack.c.b16 %v1122, %v1115
        %v1284 = vpack.c.b16 %v1123, %v1116
        %v1285 = vpack.c.b16 %v1124, %v1117
        %v1286 = vpack.c.b16 %v1125, %v1118
        %v1287 = vpack.c.b16 %v1126, %v1119
        %v1288 = vpack.c.b16 %v1127, %v1120
        %v1289 = vpack.c.b16 %v1135, %v1128
        %v1290 = vpack.c.b16 %v1136, %v1129
        %v1291 = vpack.c.b16 %v1137, %v1130
        %v1292 = vpack.c.b16 %v1138, %v1131
        %v1293 = vpack.c.b16 %v1139, %v1132
        %v1294 = vpack.c.b16 %v1140, %v1133
        %v1295 = vpack.c.b16 %v1141, %v1134
        %v1296 = vpack.c.b16 %v1149, %v1142
        %v1297 = vpack.c.b16 %v1150, %v1143
        %v1298 = vpack.c.b16 %v1151, %v1144
        %v1299 = vpack.c.b16 %v1152, %v1145
        %v1300 = vpack.c.b16 %v1153, %v1146
        %v1301 = vpack.c.b16 %v1154, %v1147
        %v1302 = vpack.c.b16 %v1155, %v1148
        %v1303 = vpack.c.b16 %v1163, %v1156
        %v1304 = vpack.c.b16 %v1164, %v1157
        %v1305 = vpack.c.b16 %v1165, %v1158
        %v1306 = vpack.c.b16 %v1166, %v1159
        %v1307 = vpack.c.b16 %v1167, %v1160
        %v1308 = vpack.c.b16 %v1168, %v1161
        %v1309 = vpack.c.b16 %v1169, %v1162
        %v1310 = vpack.c.b16 %v1177, %v1170
        %v1311 = vpack.c.b16 %v1178, %v1171
        %v1312 = vpack.c.b16 %v1179, %v1172
        %v1313 = vpack.c.b16 %v1180, %v1173
        %v1314 = vpack.c.b16 %v1181, %v1174
        %v1315 = vpack.c.b16 %v1182, %v1175
        %v1316 = vpack.c.b16 %v1183, %v1176
        %v1317 = vpack.c.b16 %v1191, %v1184
        %v1318 = vpack.c.b16 %v1192, %v1185
        %v1319 = vpack.c.b16 %v1193, %v1186
        %v1320 = vpack.c.b16 %v1194, %v1187
        %v1321 = vpack.c.b16 %v1195, %v1188
        %v1322 = vpack.c.b16 %v1196, %v1189
        %v1323 = vpack.c.b16 %v1197, %v1190
        %v1324 = vpack.c.b16 %v1205, %v1198
        %v1325 = vpack.c.b16 %v1206, %v1199
        %v1326 = vpack.c.b16 %v1207, %v1200
        %v1327 = vpack.c.b16 %v1208, %v1201
        %v1328 = vpack.c.b16 %v1209, %v1202
        %v1329 = vpack.c.b16 %v1210, %v1203
        %v1330 = vpack.c.b16 %v1211, %v1204
        %v1331 = vpack.c.b16 %v1219, %v1212
        %v1332 = vpack.c.b16 %v1220, %v1213
        %v1333 = vpack.c.b16 %v1221, %v1214
        %v1334 = vpack.c.b16 %v1222, %v1215
        %v1335 = vpack.c.b16 %v1223, %v1216
        %v1336 = vpack.c.b16 %v1224, %v1217
        %v1337 = vpack.c.b16 %v1225, %v1218
        %1450 = vmatprep.subr.bf16.mxu0 %v1276
        %1451 = vmatpush1.bf16.msra.mxu0 %v1275
        %1452 = vmatprep.subr.bf16.mxu0 %v1269
        %1453 = vmatpush1.bf16.msra.mxu0 %v1268
        %1454 = vmatprep.subr.bf16.mxu0 %v1262
        %1455 = vmatpush1.bf16.msra.mxu0 %v1261
        %1456 = vmatprep.subr.bf16.mxu0 %v1255
        %1457 = vmatpush1.bf16.msra.mxu0 %v1254
        %1458 = vmatprep.subr.bf16.mxu0 %v1248
        %1459 = vmatpush1.bf16.msra.mxu0 %v1247
        %1460 = vmatprep.subr.bf16.mxu0 %v1241
        %1461 = vmatpush1.bf16.msra.mxu0 %v1240
        %1462 = vmatprep.subr.bf16.mxu0 %v1234
        %1463 = vmatpush1.bf16.msra.mxu0 %v1233
        %1464 = vmatprep.subr.bf16.mxu0 %v1227
        %1465 = vmatpush1.bf16.msra.mxu0 %v1226
        %1466 = vmatprep.subr.bf16.mxu0 %v1332
        %1467 = vmatpush2.bf16.msra.mxu0 %v1331
        %1468 = vmatprep.subr.bf16.mxu0 %v1325
        %1469 = vmatpush2.bf16.msra.mxu0 %v1324
        %1470 = vmatprep.subr.bf16.mxu0 %v1318
        %1471 = vmatpush2.bf16.msra.mxu0 %v1317
        %1472 = vmatprep.subr.bf16.mxu0 %v1311
        %1473 = vmatpush2.bf16.msra.mxu0 %v1310
        %1474 = vmatprep.subr.bf16.mxu0 %v1304
        %1475 = vmatpush2.bf16.msra.mxu0 %v1303
        %1476 = vmatprep.subr.bf16.mxu0 %v1297
        %1477 = vmatpush2.bf16.msra.mxu0 %v1296
        %1478 = vmatprep.subr.bf16.mxu0 %v1290
        %1479 = vmatpush2.bf16.msra.mxu0 %v1289
        %1480 = vmatprep.subr.bf16.mxu0 %v1283
        %1481 = vmatpush2.bf16.msra.mxu0 %v1282
        %1482 = vmatprep.mubr.bf16.mxu0 %v745
        %1483 = vmatmul.mubr.bf16.gmra.mxu0 %v744
        %v1484 = vpop.f32.mrf.mxu0
        %v1485 = vadd.f32 0.0, %v1484
        %v1486 = vpop.f32.mrf.mxu0
        %v1487 = vadd.f32 0.0, %v1486
        %v1488 = vpop.f32.mrf.mxu0
        %v1489 = vpop.f32.mrf.mxu0
        %1490 = vdwg.mxu0
        %1491 = vmatprep.subr.bf16.mxu0 %v1278
        %1492 = vmatpush1.bf16.msra.mxu0 %v1277
        %1493 = vmatprep.subr.bf16.mxu0 %v1271
        %1494 = vmatpush1.bf16.msra.mxu0 %v1270
        %1495 = vmatprep.subr.bf16.mxu0 %v1264
        %1496 = vmatpush1.bf16.msra.mxu0 %v1263
        %1497 = vmatprep.subr.bf16.mxu0 %v1257
        %1498 = vmatpush1.bf16.msra.mxu0 %v1256
        %1499 = vmatprep.subr.bf16.mxu0 %v1250
        %1500 = vmatpush1.bf16.msra.mxu0 %v1249
        %1501 = vmatprep.subr.bf16.mxu0 %v1243
        %1502 = vmatpush1.bf16.msra.mxu0 %v1242
        %1503 = vmatprep.subr.bf16.mxu0 %v1236
        %1504 = vmatpush1.bf16.msra.mxu0 %v1235
        %1505 = vmatprep.subr.bf16.mxu0 %v1229
        %1506 = vmatpush1.bf16.msra.mxu0 %v1228
        %1507 = vmatprep.subr.bf16.mxu0 %v1334
        %1508 = vmatpush2.bf16.msra.mxu0 %v1333
        %1509 = vmatprep.subr.bf16.mxu0 %v1327
        %1510 = vmatpush2.bf16.msra.mxu0 %v1326
        %1511 = vmatprep.subr.bf16.mxu0 %v1320
        %1512 = vmatpush2.bf16.msra.mxu0 %v1319
        %1513 = vmatprep.subr.bf16.mxu0 %v1313
        %1514 = vmatpush2.bf16.msra.mxu0 %v1312
        %1515 = vmatprep.subr.bf16.mxu0 %v1306
        %1516 = vmatpush2.bf16.msra.mxu0 %v1305
        %1517 = vmatprep.subr.bf16.mxu0 %v1299
        %1518 = vmatpush2.bf16.msra.mxu0 %v1298
        %1519 = vmatprep.subr.bf16.mxu0 %v1292
        %1520 = vmatpush2.bf16.msra.mxu0 %v1291
        %1521 = vmatprep.subr.bf16.mxu0 %v1285
        %1522 = vmatpush2.bf16.msra.mxu0 %v1284
        %1523 = vmatprep.mubr.bf16.mxu0 %v745
        %1524 = vmatmul.mubr.bf16.gmra.mxu0 %v744
        %v1525 = vpop.f32.mrf.mxu0
        %v1526 = vadd.f32 0.0, %v1525
        %v1527 = vpop.f32.mrf.mxu0
        %v1528 = vadd.f32 0.0, %v1527
        %v1529 = vpop.f32.mrf.mxu0
        %v1530 = vpop.f32.mrf.mxu0
        %1531 = vdwg.mxu0
        %1532 = vmatprep.subr.bf16.mxu0 %v1280
        %1533 = vmatpush1.bf16.msra.mxu0 %v1279
        %1534 = vmatprep.subr.bf16.mxu0 %v1273
        %1535 = vmatpush1.bf16.msra.mxu0 %v1272
        %1536 = vmatprep.subr.bf16.mxu0 %v1266
        %1537 = vmatpush1.bf16.msra.mxu0 %v1265
        %1538 = vmatprep.subr.bf16.mxu0 %v1259
        %1539 = vmatpush1.bf16.msra.mxu0 %v1258
        %1540 = vmatprep.subr.bf16.mxu0 %v1252
        %1541 = vmatpush1.bf16.msra.mxu0 %v1251
        %1542 = vmatprep.subr.bf16.mxu0 %v1245
        %1543 = vmatpush1.bf16.msra.mxu0 %v1244
        %1544 = vmatprep.subr.bf16.mxu0 %v1238
        %1545 = vmatpush1.bf16.msra.mxu0 %v1237
        %1546 = vmatprep.subr.bf16.mxu0 %v1231
        %1547 = vmatpush1.bf16.msra.mxu0 %v1230
        %1548 = vmatprep.subr.bf16.mxu0 %v1336
        %1549 = vmatpush2.bf16.msra.mxu0 %v1335
        %1550 = vmatprep.subr.bf16.mxu0 %v1329
        %1551 = vmatpush2.bf16.msra.mxu0 %v1328
        %1552 = vmatprep.subr.bf16.mxu0 %v1322
        %1553 = vmatpush2.bf16.msra.mxu0 %v1321
        %1554 = vmatprep.subr.bf16.mxu0 %v1315
        %1555 = vmatpush2.bf16.msra.mxu0 %v1314
        %1556 = vmatprep.subr.bf16.mxu0 %v1308
        %1557 = vmatpush2.bf16.msra.mxu0 %v1307
        %1558 = vmatprep.subr.bf16.mxu0 %v1301
        %1559 = vmatpush2.bf16.msra.mxu0 %v1300
        %1560 = vmatprep.subr.bf16.mxu0 %v1294
        %1561 = vmatpush2.bf16.msra.mxu0 %v1293
        %1562 = vmatprep.subr.bf16.mxu0 %v1287
        %1563 = vmatpush2.bf16.msra.mxu0 %v1286
        %1564 = vmatprep.mubr.bf16.mxu0 %v745
        %1565 = vmatmul.mubr.bf16.gmra.mxu0 %v744
        %v1566 = vpop.f32.mrf.mxu0
        %v1567 = vadd.f32 0.0, %v1566
        %v1568 = vpop.f32.mrf.mxu0
        %v1569 = vadd.f32 0.0, %v1568
        %v1570 = vpop.f32.mrf.mxu0
        %v1571 = vpop.f32.mrf.mxu0
        %1572 = vdwg.mxu0
        %1573 = vmatprep.subr.bf16.mxu0 0
        %1574 = vmatpush1.bf16.msra.mxu0 %v1281
        %1575 = vmatprep.subr.bf16.mxu0 0
        %1576 = vmatpush1.bf16.msra.mxu0 %v1274
        %1577 = vmatprep.subr.bf16.mxu0 0
        %1578 = vmatpush1.bf16.msra.mxu0 %v1267
        %1579 = vmatprep.subr.bf16.mxu0 0
        %1580 = vmatpush1.bf16.msra.mxu0 %v1260
        %1581 = vmatprep.subr.bf16.mxu0 0
        %1582 = vmatpush1.bf16.msra.mxu0 %v1253
        %1583 = vmatprep.subr.bf16.mxu0 0
        %1584 = vmatpush1.bf16.msra.mxu0 %v1246
        %1585 = vmatprep.subr.bf16.mxu0 0
        %1586 = vmatpush1.bf16.msra.mxu0 %v1239
        %1587 = vmatprep.subr.bf16.mxu0 0
        %1588 = vmatpush1.bf16.msra.mxu0 %v1232
        %1589 = vmatprep.subr.bf16.mxu0 0
        %1590 = vmatpush2.bf16.msra.mxu0 %v1337
        %1591 = vmatprep.subr.bf16.mxu0 0
        %1592 = vmatpush2.bf16.msra.mxu0 %v1330
        %1593 = vmatprep.subr.bf16.mxu0 0
        %1594 = vmatpush2.bf16.msra.mxu0 %v1323
        %1595 = vmatprep.subr.bf16.mxu0 0
        %1596 = vmatpush2.bf16.msra.mxu0 %v1316
        %1597 = vmatprep.subr.bf16.mxu0 0
        %1598 = vmatpush2.bf16.msra.mxu0 %v1309
        %1599 = vmatprep.subr.bf16.mxu0 0
        %1600 = vmatpush2.bf16.msra.mxu0 %v1302
        %1601 = vmatprep.subr.bf16.mxu0 0
        %1602 = vmatpush2.bf16.msra.mxu0 %v1295
        %1603 = vmatprep.subr.bf16.mxu0 0
        %1604 = vmatpush2.bf16.msra.mxu0 %v1288
        %1605 = vmatprep.mubr.bf16.mxu0 %v745
        %1606 = vmatmul.mubr.bf16.gmra.mxu0 %v744
        %v1607 = vpop.f32.mrf.mxu0
        %v1608 = vadd.f32 0.0, %v1607
        %v1609 = vpop.f32.mrf.mxu0
        %v1610 = vpop.f32.mrf.mxu0
        %v1611 = vpop.f32.mrf.mxu0
        %1612 = vdwg.mxu0
        %v1613 = vadd.f32 %v735, %v1485
        %v1614 = vadd.f32 %v736, %v1487
        %v1615 = vadd.f32 %v737, %v1526
        %v1616 = vadd.f32 %v738, %v1528
        %v1617 = vadd.f32 %v739, %v1567
        %v1618 = vadd.f32 %v740, %v1569
        %v1619 = vadd.f32 %v741, %v1608
        %1620 = vst [vmem:[#allocation2] sm:$0xff] %v1613
        %1621 = vst [vmem:[#allocation2 + $0x8] sm:$0xff] %v1614
        %1622 = vst [vmem:[#allocation2 + $0x10] sm:$0xff] %v1615
        %1623 = vst [vmem:[#allocation2 + $0x18] sm:$0xff] %v1616
        %1624 = vst [vmem:[#allocation2 + $0x20] sm:$0xff] %v1617
        %1625 = vst [vmem:[#allocation2 + $0x28] sm:$0xff] %v1618
        %1626 = vst [vmem:[#allocation2 + $0x30] sm:$0xff] %v1619
        %p1627 = scmp.eq.s32.totalorder %s42, 2
        // Predicated region
        $region137: #{predrnn_cell.1} parent=75 // pred_check
          %p1628 = pneg %p1627
        $region138: #{predrnn_cell.1} parent=75 // pred_check_branch
          %1630 = sbr.rel (%p1628) target = $region140
        $region139: #{predrnn_cell.1} parent=75 // pred_region
          %v1631 = vld [vmem:[#allocation2] sm:$0xff]
          %v1632 = vld [vmem:[#allocation2 + $0x8] sm:$0xff]
          %v1633 = vld [vmem:[#allocation2 + $0x10] sm:$0xff]
          %v1634 = vld [vmem:[#allocation2 + $0x18] sm:$0xff]
          %v1635 = vld [vmem:[#allocation2 + $0x20] sm:$0xff]
          %v1636 = vld [vmem:[#allocation2 + $0x28] sm:$0xff]
          %v1637 = vld [vmem:[#allocation2 + $0x30] sm:$0xff]
          %v1638 = vld [vmem:[#allocation8] sm:$0xff]
          %v1640 = vlaneseq
          %v1641 = vshrl.u32 %v1640, 7
          %v1642 = vsub.s32 0, %v1641
          %v1643 = vrot.slane %v1638, %v1642
          %v1644 = vlaneseq
          %v1645 = vshrl.u32 %v1644, 7
          %v1646 = vsub.s32 1, %v1645
          %v1647 = vrot.slane %v1638, %v1646
          %v1648 = vlaneseq
          %v1649 = vshrl.u32 %v1648, 7
          %v1650 = vsub.s32 2, %v1649
          %v1651 = vrot.slane %v1638, %v1650
          %v1652 = vlaneseq
          %v1653 = vshrl.u32 %v1652, 7
          %v1654 = vsub.s32 3, %v1653
          %v1655 = vrot.slane %v1638, %v1654
          %v1656 = vlaneseq
          %v1657 = vshrl.u32 %v1656, 7
          %v1658 = vsub.s32 4, %v1657
          %v1659 = vrot.slane %v1638, %v1658
          %v1660 = vlaneseq
          %v1661 = vshrl.u32 %v1660, 7
          %v1662 = vsub.s32 5, %v1661
          %v1663 = vrot.slane %v1638, %v1662
          %v1664 = vlaneseq
          %v1665 = vshrl.u32 %v1664, 7
          %v1666 = vsub.s32 6, %v1665
          %v1667 = vrot.slane %v1638, %v1666
          %v1675 = vadd.f32 %v1631, %v1643
          %v1676 = vadd.f32 %v1632, %v1647
          %v1677 = vadd.f32 %v1633, %v1651
          %v1678 = vadd.f32 %v1634, %v1655
          %v1679 = vadd.f32 %v1635, %v1659
          %v1680 = vadd.f32 %v1636, %v1663
          %v1681 = vadd.f32 %v1637, %v1667
          %v1682 = vld [vmem:[#allocation9] sm:$0xff]
          %v1683 = vld [vmem:[#allocation11] sm:$0xff]
          %v1684 = vld [vmem:[#allocation12] sm:$0xff]
          %v1685 = vpack.c.bf16 %v1682, %v1682
          %v1686 = vld [vmem:[#allocation14] sm:$0xff]
          %v1687 = vld [vmem:[#allocation14 + $0x8] sm:$0xff]
          %v1688 = vld [vmem:[#allocation14 + $0x10] sm:$0xff]
          %v1689 = vld [vmem:[#allocation14 + $0x18] sm:$0xff]
          %v1690 = vld [vmem:[#allocation14 + $0x20] sm:$0xff]
          %v1691 = vld [vmem:[#allocation14 + $0x28] sm:$0xff]
          %v1692 = vld [vmem:[#allocation14 + $0x30] sm:$0xff]
          %v1693 = vld [vmem:[#allocation14 + $0x38] sm:$0xff]
          %v1694 = vld [vmem:[#allocation14 + $0x40] sm:$0xff]
          %v1695 = vld [vmem:[#allocation14 + $0x48] sm:$0xff]
          %v1696 = vld [vmem:[#allocation14 + $0x50] sm:$0xff]
          %v1697 = vld [vmem:[#allocation14 + $0x58] sm:$0xff]
          %v1698 = vld [vmem:[#allocation14 + $0x60] sm:$0xff]
          %v1699 = vld [vmem:[#allocation14 + $0x68] sm:$0xff]
          %v1700 = vld [vmem:[#allocation14 + $0x70] sm:$0xff]
          %v1701 = vld [vmem:[#allocation14 + $0x78] sm:$0xff]
          %v1702 = vld [vmem:[#allocation14 + $0x80] sm:$0xff]
          %v1703 = vld [vmem:[#allocation14 + $0x88] sm:$0xff]
          %v1704 = vld [vmem:[#allocation14 + $0x90] sm:$0xff]
          %v1705 = vld [vmem:[#allocation14 + $0x98] sm:$0xff]
          %v1706 = vld [vmem:[#allocation14 + $0xa0] sm:$0xff]
          %v1707 = vld [vmem:[#allocation14 + $0xa8] sm:$0xff]
          %v1708 = vld [vmem:[#allocation14 + $0xb0] sm:$0xff]
          %v1709 = vld [vmem:[#allocation14 + $0xb8] sm:$0xff]
          %v1710 = vld [vmem:[#allocation14 + $0xc0] sm:$0xff]
          %v1711 = vld [vmem:[#allocation14 + $0xc8] sm:$0xff]
          %v1712 = vld [vmem:[#allocation14 + $0xd0] sm:$0xff]
          %v1713 = vld [vmem:[#allocation14 + $0xd8] sm:$0xff]
          %v1714 = vld [vmem:[#allocation14 + $0xe0] sm:$0xff]
          %v1715 = vld [vmem:[#allocation14 + $0xe8] sm:$0xff]
          %v1716 = vld [vmem:[#allocation14 + $0xf0] sm:$0xff]
          %v1717 = vld [vmem:[#allocation14 + $0xf8] sm:$0xff]
          %v1718 = vld [vmem:[#allocation15] sm:$0xf]
          %v1720 = vlaneseq
          %v1721 = vshrl.u32 %v1720, 7
          %v1722 = vsub.s32 0, %v1721
          %v1723 = vrot.slane %v1718, %v1722
          %v1724 = vlaneseq
          %v1725 = vshrl.u32 %v1724, 7
          %v1726 = vsub.s32 1, %v1725
          %v1727 = vrot.slane %v1718, %v1726
          %v1728 = vlaneseq
          %v1729 = vshrl.u32 %v1728, 7
          %v1730 = vsub.s32 2, %v1729
          %v1731 = vrot.slane %v1718, %v1730
          %v1732 = vlaneseq
          %v1733 = vshrl.u32 %v1732, 7
          %v1734 = vsub.s32 3, %v1733
          %v1735 = vrot.slane %v1718, %v1734
          %v1772 = vunpack.c.l.b16 %v1686
          %v1773 = vunpack.c.h.b16 %v1686
          %v1774 = vunpack.c.l.b16 %v1687
          %v1775 = vunpack.c.h.b16 %v1687
          %v1776 = vunpack.c.l.b16 %v1688
          %v1777 = vunpack.c.h.b16 %v1688
          %v1778 = vunpack.c.l.b16 %v1689
          %v1779 = vunpack.c.h.b16 %v1689
          %v1780 = vunpack.c.l.b16 %v1690
          %v1781 = vunpack.c.h.b16 %v1690
          %v1782 = vunpack.c.l.b16 %v1691
          %v1783 = vunpack.c.h.b16 %v1691
          %v1784 = vunpack.c.l.b16 %v1692
          %v1785 = vunpack.c.h.b16 %v1692
          %v1786 = vunpack.c.l.b16 %v1693
          %v1787 = vunpack.c.h.b16 %v1693
          %v1788 = vunpack.c.l.b16 %v1694
          %v1789 = vunpack.c.h.b16 %v1694
          %v1790 = vunpack.c.l.b16 %v1695
          %v1791 = vunpack.c.h.b16 %v1695
          %v1792 = vunpack.c.l.b16 %v1696
          %v1793 = vunpack.c.h.b16 %v1696
          %v1794 = vunpack.c.l.b16 %v1697
          %v1795 = vunpack.c.h.b16 %v1697
          %v1796 = vunpack.c.l.b16 %v1698
          %v1797 = vunpack.c.h.b16 %v1698
          %v1798 = vunpack.c.l.b16 %v1699
          %v1799 = vunpack.c.h.b16 %v1699
          %v1800 = vunpack.c.l.b16 %v1700
          %v1801 = vunpack.c.h.b16 %v1700
          %v1802 = vunpack.c.l.b16 %v1701
          %v1803 = vunpack.c.h.b16 %v1701
          %v1804 = vunpack.c.l.b16 %v1702
          %v1805 = vunpack.c.h.b16 %v1702
          %v1806 = vunpack.c.l.b16 %v1703
          %v1807 = vunpack.c.h.b16 %v1703
          %v1808 = vunpack.c.l.b16 %v1704
          %v1809 = vunpack.c.h.b16 %v1704
          %v1810 = vunpack.c.l.b16 %v1705
          %v1811 = vunpack.c.h.b16 %v1705
          %v1812 = vunpack.c.l.b16 %v1706
          %v1813 = vunpack.c.h.b16 %v1706
          %v1814 = vunpack.c.l.b16 %v1707
          %v1815 = vunpack.c.h.b16 %v1707
          %v1816 = vunpack.c.l.b16 %v1708
          %v1817 = vunpack.c.h.b16 %v1708
          %v1818 = vunpack.c.l.b16 %v1709
          %v1819 = vunpack.c.h.b16 %v1709
          %v1820 = vunpack.c.l.b16 %v1710
          %v1821 = vunpack.c.h.b16 %v1710
          %v1822 = vunpack.c.l.b16 %v1711
          %v1823 = vunpack.c.h.b16 %v1711
          %v1824 = vunpack.c.l.b16 %v1712
          %v1825 = vunpack.c.h.b16 %v1712
          %v1826 = vunpack.c.l.b16 %v1713
          %v1827 = vunpack.c.h.b16 %v1713
          %v1828 = vunpack.c.l.b16 %v1714
          %v1829 = vunpack.c.h.b16 %v1714
          %v1830 = vunpack.c.l.b16 %v1715
          %v1831 = vunpack.c.h.b16 %v1715
          %v1832 = vunpack.c.l.b16 %v1716
          %v1833 = vunpack.c.h.b16 %v1716
          %v1834 = vunpack.c.l.b16 %v1717
          %v1835 = vunpack.c.h.b16 %v1717
          %v1836 = vpack.c.b16 %v1776, %v1772
          %v1837 = vpack.c.b16 %v1777, %v1773
          %v1838 = vpack.c.b16 %v1778, %v1774
          %v1839 = vpack.c.b16 %v1779, %v1775
          %v1840 = vpack.c.b16 %v1784, %v1780
          %v1841 = vpack.c.b16 %v1785, %v1781
          %v1842 = vpack.c.b16 %v1786, %v1782
          %v1843 = vpack.c.b16 %v1787, %v1783
          %v1844 = vpack.c.b16 %v1792, %v1788
          %v1845 = vpack.c.b16 %v1793, %v1789
          %v1846 = vpack.c.b16 %v1794, %v1790
          %v1847 = vpack.c.b16 %v1795, %v1791
          %v1848 = vpack.c.b16 %v1800, %v1796
          %v1849 = vpack.c.b16 %v1801, %v1797
          %v1850 = vpack.c.b16 %v1802, %v1798
          %v1851 = vpack.c.b16 %v1803, %v1799
          %v1852 = vpack.c.b16 %v1808, %v1804
          %v1853 = vpack.c.b16 %v1809, %v1805
          %v1854 = vpack.c.b16 %v1810, %v1806
          %v1855 = vpack.c.b16 %v1811, %v1807
          %v1856 = vpack.c.b16 %v1816, %v1812
          %v1857 = vpack.c.b16 %v1817, %v1813
          %v1858 = vpack.c.b16 %v1818, %v1814
          %v1859 = vpack.c.b16 %v1819, %v1815
          %v1860 = vpack.c.b16 %v1824, %v1820
          %v1861 = vpack.c.b16 %v1825, %v1821
          %v1862 = vpack.c.b16 %v1826, %v1822
          %v1863 = vpack.c.b16 %v1827, %v1823
          %v1864 = vpack.c.b16 %v1832, %v1828
          %v1865 = vpack.c.b16 %v1833, %v1829
          %v1866 = vpack.c.b16 %v1834, %v1830
          %v1867 = vpack.c.b16 %v1835, %v1831
          %1900 = vmatprep.subr.bf16.mxu0 %v1865
          %1901 = vmatpush1.bf16.msra.mxu0 %v1864
          %1902 = vmatprep.subr.bf16.mxu0 %v1861
          %1903 = vmatpush1.bf16.msra.mxu0 %v1860
          %1904 = vmatprep.subr.bf16.mxu0 %v1857
          %1905 = vmatpush1.bf16.msra.mxu0 %v1856
          %1906 = vmatprep.subr.bf16.mxu0 %v1853
          %1907 = vmatpush1.bf16.msra.mxu0 %v1852
          %1908 = vmatprep.subr.bf16.mxu0 %v1849
          %1909 = vmatpush1.bf16.msra.mxu0 %v1848
          %1910 = vmatprep.subr.bf16.mxu0 %v1845
          %1911 = vmatpush1.bf16.msra.mxu0 %v1844
          %1912 = vmatprep.subr.bf16.mxu0 %v1841
          %1913 = vmatpush1.bf16.msra.mxu0 %v1840
          %1914 = vmatprep.subr.bf16.mxu0 %v1837
          %1915 = vmatpush1.bf16.msra.mxu0 %v1836
          %1916 = vmatprep.subr.bf16.mxu0 0
          %1917 = vmatpush2.bf16.msra.mxu0 0
          %1918 = vmatprep.subr.bf16.mxu0 0
          %1919 = vmatpush2.bf16.msra.mxu0 0
          %1920 = vmatprep.subr.bf16.mxu0 0
          %1921 = vmatpush2.bf16.msra.mxu0 0
          %1922 = vmatprep.subr.bf16.mxu0 0
          %1923 = vmatpush2.bf16.msra.mxu0 0
          %1924 = vmatprep.subr.bf16.mxu0 0
          %1925 = vmatpush2.bf16.msra.mxu0 0
          %1926 = vmatprep.subr.bf16.mxu0 0
          %1927 = vmatpush2.bf16.msra.mxu0 0
          %1928 = vmatprep.subr.bf16.mxu0 0
          %1929 = vmatpush2.bf16.msra.mxu0 0
          %1930 = vmatprep.subr.bf16.mxu0 0
          %1931 = vmatpush2.bf16.msra.mxu0 0
          %1932 = vmatprep.mubr.bf16.mxu0 0
          %1933 = vmatmul.mubr.bf16.gmra.mxu0 %v1685
          %v1934 = vpop.f32.mrf.mxu0
          %v1935 = vadd.f32 %v1723, %v1934
          %v1936 = vpop.f32.mrf.mxu0
          %v1937 = vadd.f32 %v1727, %v1936
          %v1938 = vpop.f32.mrf.mxu0
          %v1939 = vpop.f32.mrf.mxu0
          %1940 = vdwg.mxu0
          %1941 = vmatprep.subr.bf16.mxu0 %v1867
          %1942 = vmatpush1.bf16.msra.mxu0 %v1866
          %1943 = vmatprep.subr.bf16.mxu0 %v1863
          %1944 = vmatpush1.bf16.msra.mxu0 %v1862
          %1945 = vmatprep.subr.bf16.mxu0 %v1859
          %1946 = vmatpush1.bf16.msra.mxu0 %v1858
          %1947 = vmatprep.subr.bf16.mxu0 %v1855
          %1948 = vmatpush1.bf16.msra.mxu0 %v1854
          %1949 = vmatprep.subr.bf16.mxu0 %v1851
          %1950 = vmatpush1.bf16.msra.mxu0 %v1850
          %1951 = vmatprep.subr.bf16.mxu0 %v1847
          %1952 = vmatpush1.bf16.msra.mxu0 %v1846
          %1953 = vmatprep.subr.bf16.mxu0 %v1843
          %1954 = vmatpush1.bf16.msra.mxu0 %v1842
          %1955 = vmatprep.subr.bf16.mxu0 %v1839
          %1956 = vmatpush1.bf16.msra.mxu0 %v1838
          %1957 = vmatprep.subr.bf16.mxu0 0
          %1958 = vmatpush2.bf16.msra.mxu0 0
          %1959 = vmatprep.subr.bf16.mxu0 0
          %1960 = vmatpush2.bf16.msra.mxu0 0
          %1961 = vmatprep.subr.bf16.mxu0 0
          %1962 = vmatpush2.bf16.msra.mxu0 0
          %1963 = vmatprep.subr.bf16.mxu0 0
          %1964 = vmatpush2.bf16.msra.mxu0 0
          %1965 = vmatprep.subr.bf16.mxu0 0
          %1966 = vmatpush2.bf16.msra.mxu0 0
          %1967 = vmatprep.subr.bf16.mxu0 0
          %1968 = vmatpush2.bf16.msra.mxu0 0
          %1969 = vmatprep.subr.bf16.mxu0 0
          %1970 = vmatpush2.bf16.msra.mxu0 0
          %1971 = vmatprep.subr.bf16.mxu0 0
          %1972 = vmatpush2.bf16.msra.mxu0 0
          %1973 = vmatprep.mubr.bf16.mxu0 0
          %1974 = vmatmul.mubr.bf16.gmra.mxu0 %v1685
          %v1975 = vpop.f32.mrf.mxu0
          %v1976 = vadd.f32 %v1731, %v1975
          %v1977 = vpop.f32.mrf.mxu0
          %v1978 = vadd.f32 %v1735, %v1977
          %v1979 = vpop.f32.mrf.mxu0
          %v1980 = vpop.f32.mrf.mxu0
          %1981 = vdwg.mxu0
          %v1982 = vpack.c.bf16 %v1684, %v1684
          %v1983 = vld [vmem:[#allocation17] sm:$0xff]
          %v1984 = vld [vmem:[#allocation17 + $0x8] sm:$0xf]
          %v1985 = vld [vmem:[#allocation17 + $0xc] sm:$0xff]
          %v1986 = vld [vmem:[#allocation17 + $0x14] sm:$0xf]
          %v1987 = vld [vmem:[#allocation17 + $0x18] sm:$0xff]
          %v1988 = vld [vmem:[#allocation17 + $0x20] sm:$0xf]
          %v1989 = vld [vmem:[#allocation17 + $0x24] sm:$0xff]
          %v1990 = vld [vmem:[#allocation17 + $0x2c] sm:$0xf]
          %v1991 = vld [vmem:[#allocation17 + $0x30] sm:$0xff]
          %v1992 = vld [vmem:[#allocation17 + $0x38] sm:$0xf]
          %v1993 = vld [vmem:[#allocation17 + $0x3c] sm:$0xff]
          %v1994 = vld [vmem:[#allocation17 + $0x44] sm:$0xf]
          %v1995 = vld [vmem:[#allocation17 + $0x48] sm:$0xff]
          %v1996 = vld [vmem:[#allocation17 + $0x50] sm:$0xf]
          %v1997 = vld [vmem:[#allocation17 + $0x54] sm:$0xff]
          %v1998 = vld [vmem:[#allocation17 + $0x5c] sm:$0xf]
          %v1999 = vld [vmem:[#allocation17 + $0x60] sm:$0xff]
          %v2000 = vld [vmem:[#allocation17 + $0x68] sm:$0xf]
          %v2001 = vld [vmem:[#allocation17 + $0x6c] sm:$0xff]
          %v2002 = vld [vmem:[#allocation17 + $0x74] sm:$0xf]
          %v2003 = vld [vmem:[#allocation17 + $0x78] sm:$0xff]
          %v2004 = vld [vmem:[#allocation17 + $0x80] sm:$0xf]
          %v2005 = vld [vmem:[#allocation17 + $0x84] sm:$0xff]
          %v2006 = vld [vmem:[#allocation17 + $0x8c] sm:$0xf]
          %v2007 = vld [vmem:[#allocation17 + $0x90] sm:$0xff]
          %v2008 = vld [vmem:[#allocation17 + $0x98] sm:$0xf]
          %v2009 = vld [vmem:[#allocation17 + $0x9c] sm:$0xff]
          %v2010 = vld [vmem:[#allocation17 + $0xa4] sm:$0xf]
          %v2011 = vld [vmem:[#allocation17 + $0xa8] sm:$0xff]
          %v2012 = vld [vmem:[#allocation17 + $0xb0] sm:$0xf]
          %v2013 = vld [vmem:[#allocation17 + $0xb4] sm:$0xff]
          %v2014 = vld [vmem:[#allocation17 + $0xbc] sm:$0xf]
          %v2015 = vld [vmem:[#allocation18] sm:$0x7]
          %v2017 = vlaneseq
          %v2018 = vshrl.u32 %v2017, 7
          %v2019 = vsub.s32 0, %v2018
          %v2020 = vrot.slane %v2015, %v2019
          %v2021 = vlaneseq
          %v2022 = vshrl.u32 %v2021, 7
          %v2023 = vsub.s32 1, %v2022
          %v2024 = vrot.slane %v2015, %v2023
          %v2025 = vlaneseq
          %v2026 = vshrl.u32 %v2025, 7
          %v2027 = vsub.s32 2, %v2026
          %v2028 = vrot.slane %v2015, %v2027
          %v2064 = vunpack.c.l.b16 %v1983
          %v2065 = vunpack.c.h.b16 %v1983
          %v2066 = vunpack.c.l.b16 %v1984
          %v2067 = vunpack.c.l.b16 %v1985
          %v2068 = vunpack.c.h.b16 %v1985
          %v2069 = vunpack.c.l.b16 %v1986
          %v2070 = vunpack.c.l.b16 %v1987
          %v2071 = vunpack.c.h.b16 %v1987
          %v2072 = vunpack.c.l.b16 %v1988
          %v2073 = vunpack.c.l.b16 %v1989
          %v2074 = vunpack.c.h.b16 %v1989
          %v2075 = vunpack.c.l.b16 %v1990
          %v2076 = vunpack.c.l.b16 %v1991
          %v2077 = vunpack.c.h.b16 %v1991
          %v2078 = vunpack.c.l.b16 %v1992
          %v2079 = vunpack.c.l.b16 %v1993
          %v2080 = vunpack.c.h.b16 %v1993
          %v2081 = vunpack.c.l.b16 %v1994
          %v2082 = vunpack.c.l.b16 %v1995
          %v2083 = vunpack.c.h.b16 %v1995
          %v2084 = vunpack.c.l.b16 %v1996
          %v2085 = vunpack.c.l.b16 %v1997
          %v2086 = vunpack.c.h.b16 %v1997
          %v2087 = vunpack.c.l.b16 %v1998
          %v2088 = vunpack.c.l.b16 %v1999
          %v2089 = vunpack.c.h.b16 %v1999
          %v2090 = vunpack.c.l.b16 %v2000
          %v2091 = vunpack.c.l.b16 %v2001
          %v2092 = vunpack.c.h.b16 %v2001
          %v2093 = vunpack.c.l.b16 %v2002
          %v2094 = vunpack.c.l.b16 %v2003
          %v2095 = vunpack.c.h.b16 %v2003
          %v2096 = vunpack.c.l.b16 %v2004
          %v2097 = vunpack.c.l.b16 %v2005
          %v2098 = vunpack.c.h.b16 %v2005
          %v2099 = vunpack.c.l.b16 %v2006
          %v2100 = vunpack.c.l.b16 %v2007
          %v2101 = vunpack.c.h.b16 %v2007
          %v2102 = vunpack.c.l.b16 %v2008
          %v2103 = vunpack.c.l.b16 %v2009
          %v2104 = vunpack.c.h.b16 %v2009
          %v2105 = vunpack.c.l.b16 %v2010
          %v2106 = vunpack.c.l.b16 %v2011
          %v2107 = vunpack.c.h.b16 %v2011
          %v2108 = vunpack.c.l.b16 %v2012
          %v2109 = vunpack.c.l.b16 %v2013
          %v2110 = vunpack.c.h.b16 %v2013
          %v2111 = vunpack.c.l.b16 %v2014
          %v2112 = vpack.c.b16 %v2067, %v2064
          %v2113 = vpack.c.b16 %v2068, %v2065
          %v2114 = vpack.c.b16 %v2069, %v2066
          %v2115 = vpack.c.b16 %v2073, %v2070
          %v2116 = vpack.c.b16 %v2074, %v2071
          %v2117 = vpack.c.b16 %v2075, %v2072
          %v2118 = vpack.c.b16 %v2079, %v2076
          %v2119 = vpack.c.b16 %v2080, %v2077
          %v2120 = vpack.c.b16 %v2081, %v2078
          %v2121 = vpack.c.b16 %v2085, %v2082
          %v2122 = vpack.c.b16 %v2086, %v2083
          %v2123 = vpack.c.b16 %v2087, %v2084
          %v2124 = vpack.c.b16 %v2091, %v2088
          %v2125 = vpack.c.b16 %v2092, %v2089
          %v2126 = vpack.c.b16 %v2093, %v2090
          %v2127 = vpack.c.b16 %v2097, %v2094
          %v2128 = vpack.c.b16 %v2098, %v2095
          %v2129 = vpack.c.b16 %v2099, %v2096
          %v2130 = vpack.c.b16 %v2103, %v2100
          %v2131 = vpack.c.b16 %v2104, %v2101
          %v2132 = vpack.c.b16 %v2105, %v2102
          %v2133 = vpack.c.b16 %v2109, %v2106
          %v2134 = vpack.c.b16 %v2110, %v2107
          %v2135 = vpack.c.b16 %v2111, %v2108
          %2160 = vmatprep.subr.bf16.mxu0 %v2134
          %2161 = vmatpush1.bf16.msra.mxu0 %v2133
          %2162 = vmatprep.subr.bf16.mxu0 %v2131
          %2163 = vmatpush1.bf16.msra.mxu0 %v2130
          %2164 = vmatprep.subr.bf16.mxu0 %v2128
          %2165 = vmatpush1.bf16.msra.mxu0 %v2127
          %2166 = vmatprep.subr.bf16.mxu0 %v2125
          %2167 = vmatpush1.bf16.msra.mxu0 %v2124
          %2168 = vmatprep.subr.bf16.mxu0 %v2122
          %2169 = vmatpush1.bf16.msra.mxu0 %v2121
          %2170 = vmatprep.subr.bf16.mxu0 %v2119
          %2171 = vmatpush1.bf16.msra.mxu0 %v2118
          %2172 = vmatprep.subr.bf16.mxu0 %v2116
          %2173 = vmatpush1.bf16.msra.mxu0 %v2115
          %2174 = vmatprep.subr.bf16.mxu0 %v2113
          %2175 = vmatpush1.bf16.msra.mxu0 %v2112
          %2176 = vmatprep.subr.bf16.mxu0 0
          %2177 = vmatpush2.bf16.msra.mxu0 0
          %2178 = vmatprep.subr.bf16.mxu0 0
          %2179 = vmatpush2.bf16.msra.mxu0 0
          %2180 = vmatprep.subr.bf16.mxu0 0
          %2181 = vmatpush2.bf16.msra.mxu0 0
          %2182 = vmatprep.subr.bf16.mxu0 0
          %2183 = vmatpush2.bf16.msra.mxu0 0
          %2184 = vmatprep.subr.bf16.mxu0 0
          %2185 = vmatpush2.bf16.msra.mxu0 0
          %2186 = vmatprep.subr.bf16.mxu0 0
          %2187 = vmatpush2.bf16.msra.mxu0 0
          %2188 = vmatprep.subr.bf16.mxu0 0
          %2189 = vmatpush2.bf16.msra.mxu0 0
          %2190 = vmatprep.subr.bf16.mxu0 0
          %2191 = vmatpush2.bf16.msra.mxu0 0
          %2192 = vmatprep.mubr.bf16.mxu0 0
          %2193 = vmatmul.mubr.bf16.gmra.mxu0 %v1982
          %v2194 = vpop.f32.mrf.mxu0
          %v2195 = vadd.f32 %v2020, %v2194
          %v2196 = vpop.f32.mrf.mxu0
          %v2197 = vadd.f32 %v2024, %v2196
          %v2198 = vpop.f32.mrf.mxu0
          %v2199 = vpop.f32.mrf.mxu0
          %2200 = vdwg.mxu0
          %2201 = vmatprep.subr.bf16.mxu0 0
          %2202 = vmatpush1.bf16.msra.mxu0 %v2135
          %2203 = vmatprep.subr.bf16.mxu0 0
          %2204 = vmatpush1.bf16.msra.mxu0 %v2132
          %2205 = vmatprep.subr.bf16.mxu0 0
          %2206 = vmatpush1.bf16.msra.mxu0 %v2129
          %2207 = vmatprep.subr.bf16.mxu0 0
          %2208 = vmatpush1.bf16.msra.mxu0 %v2126
          %2209 = vmatprep.subr.bf16.mxu0 0
          %2210 = vmatpush1.bf16.msra.mxu0 %v2123
          %2211 = vmatprep.subr.bf16.mxu0 0
          %2212 = vmatpush1.bf16.msra.mxu0 %v2120
          %2213 = vmatprep.subr.bf16.mxu0 0
          %2214 = vmatpush1.bf16.msra.mxu0 %v2117
          %2215 = vmatprep.subr.bf16.mxu0 0
          %2216 = vmatpush1.bf16.msra.mxu0 %v2114
          %2217 = vmatprep.subr.bf16.mxu0 0
          %2218 = vmatpush2.bf16.msra.mxu0 0
          %2219 = vmatprep.subr.bf16.mxu0 0
          %2220 = vmatpush2.bf16.msra.mxu0 0
          %2221 = vmatprep.subr.bf16.mxu0 0
          %2222 = vmatpush2.bf16.msra.mxu0 0
          %2223 = vmatprep.subr.bf16.mxu0 0
          %2224 = vmatpush2.bf16.msra.mxu0 0
          %2225 = vmatprep.subr.bf16.mxu0 0
          %2226 = vmatpush2.bf16.msra.mxu0 0
          %2227 = vmatprep.subr.bf16.mxu0 0
          %2228 = vmatpush2.bf16.msra.mxu0 0
          %2229 = vmatprep.subr.bf16.mxu0 0
          %2230 = vmatpush2.bf16.msra.mxu0 0
          %2231 = vmatprep.subr.bf16.mxu0 0
          %2232 = vmatpush2.bf16.msra.mxu0 0
          %2233 = vmatprep.mubr.bf16.mxu0 0
          %2234 = vmatmul.mubr.bf16.gmra.mxu0 %v1982
          %v2235 = vpop.f32.mrf.mxu0
          %v2236 = vadd.f32 %v2028, %v2235
          %v2237 = vpop.f32.mrf.mxu0
          %v2238 = vpop.f32.mrf.mxu0
          %v2239 = vpop.f32.mrf.mxu0
          %2240 = vdwg.mxu0
          %v2241 = vadd.f32 %v1675, %v1935
          %v2242 = vtanh.pop %v2241
          %v2243 = vadd.f32 %v1676, %v1937
          %v2244 = vxor.u32 %v2243, 2147483648
          %v2245 = vmul.f32 %v2244, 1.442695
          %v2246 = vpow.pop %v2245
          %v2247 = vadd.f32 %v2246, 1.0
          %v2248 = vrcp.pop %v2247
          %v2249 = vmul.f32 1.0, %v2248
          %v2250 = vadd.f32 %v1677, %v1976
          %v2251 = vxor.u32 %v2250, 2147483648
          %v2252 = vmul.f32 %v2251, 1.442695
          %v2253 = vpow.pop %v2252
          %v2254 = vadd.f32 %v2253, 1.0
          %v2255 = vrcp.pop %v2254
          %v2256 = vmul.f32 1.0, %v2255
          %v2257 = vmul.f32 %v2256, %v1683
          %v2258 = vmul.f32 %v2249, %v2242
          %v2259 = vadd.f32 %v2257, %v2258
          %v2260 = vadd.f32 %v1678, %v2195
          %v2261 = vtanh.pop %v2260
          %v2262 = vadd.f32 %v1679, %v2197
          %v2263 = vxor.u32 %v2262, 2147483648
          %v2264 = vmul.f32 %v2263, 1.442695
          %v2265 = vpow.pop %v2264
          %v2266 = vadd.f32 %v2265, 1.0
          %v2267 = vrcp.pop %v2266
          %v2268 = vmul.f32 1.0, %v2267
          %v2269 = vadd.f32 %v1680, %v2236
          %v2270 = vxor.u32 %v2269, 2147483648
          %v2271 = vmul.f32 %v2270, 1.442695
          %v2272 = vpow.pop %v2271
          %v2273 = vadd.f32 %v2272, 1.0
          %v2274 = vrcp.pop %v2273
          %v2275 = vmul.f32 1.0, %v2274
          %v2276 = vmul.f32 %v2275, %v1684
          %v2277 = vmul.f32 %v2268, %v2261
          %v2278 = vadd.f32 %v2276, %v2277
          %v2279 = vpack.c.bf16 %v2259, %v2259
          %v2280 = vld [vmem:[#allocation20] sm:$0xff]
          %v2281 = vld [vmem:[#allocation20 + $0x8] sm:$0xff]
          %v2282 = vld [vmem:[#allocation20 + $0x10] sm:$0xff]
          %v2283 = vld [vmem:[#allocation20 + $0x18] sm:$0xff]
          %v2284 = vld [vmem:[#allocation20 + $0x20] sm:$0xff]
          %v2285 = vld [vmem:[#allocation20 + $0x28] sm:$0xff]
          %v2286 = vld [vmem:[#allocation20 + $0x30] sm:$0xff]
          %v2287 = vld [vmem:[#allocation20 + $0x38] sm:$0xff]
          %v2288 = vld [vmem:[#allocation20 + $0x40] sm:$0xff]
          %v2289 = vld [vmem:[#allocation20 + $0x48] sm:$0xff]
          %v2290 = vld [vmem:[#allocation20 + $0x50] sm:$0xff]
          %v2291 = vld [vmem:[#allocation20 + $0x58] sm:$0xff]
          %v2292 = vld [vmem:[#allocation20 + $0x60] sm:$0xff]
          %v2293 = vld [vmem:[#allocation20 + $0x68] sm:$0xff]
          %v2294 = vld [vmem:[#allocation20 + $0x70] sm:$0xff]
          %v2295 = vld [vmem:[#allocation20 + $0x78] sm:$0xff]
          %v2296 = vld [vmem:[#allocation21] sm:$0x3]
          %v2298 = vlaneseq
          %v2299 = vshrl.u32 %v2298, 7
          %v2300 = vsub.s32 0, %v2299
          %v2301 = vrot.slane %v2296, %v2300
          %v2302 = vlaneseq
          %v2303 = vshrl.u32 %v2302, 7
          %v2304 = vsub.s32 1, %v2303
          %v2305 = vrot.slane %v2296, %v2304
          %v2324 = vunpack.c.l.b16 %v2280
          %v2325 = vunpack.c.h.b16 %v2280
          %v2326 = vunpack.c.l.b16 %v2281
          %v2327 = vunpack.c.h.b16 %v2281
          %v2328 = vunpack.c.l.b16 %v2282
          %v2329 = vunpack.c.h.b16 %v2282
          %v2330 = vunpack.c.l.b16 %v2283
          %v2331 = vunpack.c.h.b16 %v2283
          %v2332 = vunpack.c.l.b16 %v2284
          %v2333 = vunpack.c.h.b16 %v2284
          %v2334 = vunpack.c.l.b16 %v2285
          %v2335 = vunpack.c.h.b16 %v2285
          %v2336 = vunpack.c.l.b16 %v2286
          %v2337 = vunpack.c.h.b16 %v2286
          %v2338 = vunpack.c.l.b16 %v2287
          %v2339 = vunpack.c.h.b16 %v2287
          %v2340 = vunpack.c.l.b16 %v2288
          %v2341 = vunpack.c.h.b16 %v2288
          %v2342 = vunpack.c.l.b16 %v2289
          %v2343 = vunpack.c.h.b16 %v2289
          %v2344 = vunpack.c.l.b16 %v2290
          %v2345 = vunpack.c.h.b16 %v2290
          %v2346 = vunpack.c.l.b16 %v2291
          %v2347 = vunpack.c.h.b16 %v2291
          %v2348 = vunpack.c.l.b16 %v2292
          %v2349 = vunpack.c.h.b16 %v2292
          %v2350 = vunpack.c.l.b16 %v2293
          %v2351 = vunpack.c.h.b16 %v2293
          %v2352 = vunpack.c.l.b16 %v2294
          %v2353 = vunpack.c.h.b16 %v2294
          %v2354 = vunpack.c.l.b16 %v2295
          %v2355 = vunpack.c.h.b16 %v2295
          %v2356 = vpack.c.b16 %v2326, %v2324
          %v2357 = vpack.c.b16 %v2327, %v2325
          %v2358 = vpack.c.b16 %v2330, %v2328
          %v2359 = vpack.c.b16 %v2331, %v2329
          %v2360 = vpack.c.b16 %v2334, %v2332
          %v2361 = vpack.c.b16 %v2335, %v2333
          %v2362 = vpack.c.b16 %v2338, %v2336
          %v2363 = vpack.c.b16 %v2339, %v2337
          %v2364 = vpack.c.b16 %v2342, %v2340
          %v2365 = vpack.c.b16 %v2343, %v2341
          %v2366 = vpack.c.b16 %v2346, %v2344
          %v2367 = vpack.c.b16 %v2347, %v2345
          %v2368 = vpack.c.b16 %v2350, %v2348
          %v2369 = vpack.c.b16 %v2351, %v2349
          %v2370 = vpack.c.b16 %v2354, %v2352
          %v2371 = vpack.c.b16 %v2355, %v2353
          %2388 = vmatprep.subr.bf16.mxu0 %v2371
          %2389 = vmatpush1.bf16.msra.mxu0 %v2370
          %2390 = vmatprep.subr.bf16.mxu0 %v2369
          %2391 = vmatpush1.bf16.msra.mxu0 %v2368
          %2392 = vmatprep.subr.bf16.mxu0 %v2367
          %2393 = vmatpush1.bf16.msra.mxu0 %v2366
          %2394 = vmatprep.subr.bf16.mxu0 %v2365
          %2395 = vmatpush1.bf16.msra.mxu0 %v2364
          %2396 = vmatprep.subr.bf16.mxu0 %v2363
          %2397 = vmatpush1.bf16.msra.mxu0 %v2362
          %2398 = vmatprep.subr.bf16.mxu0 %v2361
          %2399 = vmatpush1.bf16.msra.mxu0 %v2360
          %2400 = vmatprep.subr.bf16.mxu0 %v2359
          %2401 = vmatpush1.bf16.msra.mxu0 %v2358
          %2402 = vmatprep.subr.bf16.mxu0 %v2357
          %2403 = vmatpush1.bf16.msra.mxu0 %v2356
          %2404 = vmatprep.subr.bf16.mxu0 0
          %2405 = vmatpush2.bf16.msra.mxu0 0
          %2406 = vmatprep.subr.bf16.mxu0 0
          %2407 = vmatpush2.bf16.msra.mxu0 0
          %2408 = vmatprep.subr.bf16.mxu0 0
          %2409 = vmatpush2.bf16.msra.mxu0 0
          %2410 = vmatprep.subr.bf16.mxu0 0
          %2411 = vmatpush2.bf16.msra.mxu0 0
          %2412 = vmatprep.subr.bf16.mxu0 0
          %2413 = vmatpush2.bf16.msra.mxu0 0
          %2414 = vmatprep.subr.bf16.mxu0 0
          %2415 = vmatpush2.bf16.msra.mxu0 0
          %2416 = vmatprep.subr.bf16.mxu0 0
          %2417 = vmatpush2.bf16.msra.mxu0 0
          %2418 = vmatprep.subr.bf16.mxu0 0
          %2419 = vmatpush2.bf16.msra.mxu0 0
          %2420 = vmatprep.mubr.bf16.mxu0 0
          %2421 = vmatmul.mubr.bf16.gmra.mxu0 %v2279
          %v2422 = vpop.f32.mrf.mxu0
          %v2423 = vadd.f32 %v2301, %v2422
          %v2424 = vpop.f32.mrf.mxu0
          %v2425 = vadd.f32 %v2305, %v2424
          %v2426 = vpop.f32.mrf.mxu0
          %v2427 = vpop.f32.mrf.mxu0
          %2428 = vdwg.mxu0
          %v2429 = vpack.c.bf16 %v2278, %v2278
          %v2430 = vld [vmem:[#allocation23] sm:$0xff]
          %v2431 = vld [vmem:[#allocation23 + $0x8] sm:$0xff]
          %v2432 = vld [vmem:[#allocation23 + $0x10] sm:$0xff]
          %v2433 = vld [vmem:[#allocation23 + $0x18] sm:$0xff]
          %v2434 = vld [vmem:[#allocation23 + $0x20] sm:$0xff]
          %v2435 = vld [vmem:[#allocation23 + $0x28] sm:$0xff]
          %v2436 = vld [vmem:[#allocation23 + $0x30] sm:$0xff]
          %v2437 = vld [vmem:[#allocation23 + $0x38] sm:$0xff]
          %v2438 = vld [vmem:[#allocation23 + $0x40] sm:$0xff]
          %v2439 = vld [vmem:[#allocation23 + $0x48] sm:$0xff]
          %v2440 = vld [vmem:[#allocation23 + $0x50] sm:$0xff]
          %v2441 = vld [vmem:[#allocation23 + $0x58] sm:$0xff]
          %v2442 = vld [vmem:[#allocation23 + $0x60] sm:$0xff]
          %v2443 = vld [vmem:[#allocation23 + $0x68] sm:$0xff]
          %v2444 = vld [vmem:[#allocation23 + $0x70] sm:$0xff]
          %v2445 = vld [vmem:[#allocation23 + $0x78] sm:$0xff]
          %v2446 = vld [vmem:[#allocation24] sm:$0x3]
          %v2448 = vlaneseq
          %v2449 = vshrl.u32 %v2448, 7
          %v2450 = vsub.s32 0, %v2449
          %v2451 = vrot.slane %v2446, %v2450
          %v2452 = vlaneseq
          %v2453 = vshrl.u32 %v2452, 7
          %v2454 = vsub.s32 1, %v2453
          %v2455 = vrot.slane %v2446, %v2454
          %v2474 = vunpack.c.l.b16 %v2430
          %v2475 = vunpack.c.h.b16 %v2430
          %v2476 = vunpack.c.l.b16 %v2431
          %v2477 = vunpack.c.h.b16 %v2431
          %v2478 = vunpack.c.l.b16 %v2432
          %v2479 = vunpack.c.h.b16 %v2432
          %v2480 = vunpack.c.l.b16 %v2433
          %v2481 = vunpack.c.h.b16 %v2433
          %v2482 = vunpack.c.l.b16 %v2434
          %v2483 = vunpack.c.h.b16 %v2434
          %v2484 = vunpack.c.l.b16 %v2435
          %v2485 = vunpack.c.h.b16 %v2435
          %v2486 = vunpack.c.l.b16 %v2436
          %v2487 = vunpack.c.h.b16 %v2436
          %v2488 = vunpack.c.l.b16 %v2437
          %v2489 = vunpack.c.h.b16 %v2437
          %v2490 = vunpack.c.l.b16 %v2438
          %v2491 = vunpack.c.h.b16 %v2438
          %v2492 = vunpack.c.l.b16 %v2439
          %v2493 = vunpack.c.h.b16 %v2439
          %v2494 = vunpack.c.l.b16 %v2440
          %v2495 = vunpack.c.h.b16 %v2440
          %v2496 = vunpack.c.l.b16 %v2441
          %v2497 = vunpack.c.h.b16 %v2441
          %v2498 = vunpack.c.l.b16 %v2442
          %v2499 = vunpack.c.h.b16 %v2442
          %v2500 = vunpack.c.l.b16 %v2443
          %v2501 = vunpack.c.h.b16 %v2443
          %v2502 = vunpack.c.l.b16 %v2444
          %v2503 = vunpack.c.h.b16 %v2444
          %v2504 = vunpack.c.l.b16 %v2445
          %v2505 = vunpack.c.h.b16 %v2445
          %v2506 = vpack.c.b16 %v2476, %v2474
          %v2507 = vpack.c.b16 %v2477, %v2475
          %v2508 = vpack.c.b16 %v2480, %v2478
          %v2509 = vpack.c.b16 %v2481, %v2479
          %v2510 = vpack.c.b16 %v2484, %v2482
          %v2511 = vpack.c.b16 %v2485, %v2483
          %v2512 = vpack.c.b16 %v2488, %v2486
          %v2513 = vpack.c.b16 %v2489, %v2487
          %v2514 = vpack.c.b16 %v2492, %v2490
          %v2515 = vpack.c.b16 %v2493, %v2491
          %v2516 = vpack.c.b16 %v2496, %v2494
          %v2517 = vpack.c.b16 %v2497, %v2495
          %v2518 = vpack.c.b16 %v2500, %v2498
          %v2519 = vpack.c.b16 %v2501, %v2499
          %v2520 = vpack.c.b16 %v2504, %v2502
          %v2521 = vpack.c.b16 %v2505, %v2503
          %2538 = vmatprep.subr.bf16.mxu0 %v2521
          %2539 = vmatpush1.bf16.msra.mxu0 %v2520
          %2540 = vmatprep.subr.bf16.mxu0 %v2519
          %2541 = vmatpush1.bf16.msra.mxu0 %v2518
          %2542 = vmatprep.subr.bf16.mxu0 %v2517
          %2543 = vmatpush1.bf16.msra.mxu0 %v2516
          %2544 = vmatprep.subr.bf16.mxu0 %v2515
          %2545 = vmatpush1.bf16.msra.mxu0 %v2514
          %2546 = vmatprep.subr.bf16.mxu0 %v2513
          %2547 = vmatpush1.bf16.msra.mxu0 %v2512
          %2548 = vmatprep.subr.bf16.mxu0 %v2511
          %2549 = vmatpush1.bf16.msra.mxu0 %v2510
          %2550 = vmatprep.subr.bf16.mxu0 %v2509
          %2551 = vmatpush1.bf16.msra.mxu0 %v2508
          %2552 = vmatprep.subr.bf16.mxu0 %v2507
          %2553 = vmatpush1.bf16.msra.mxu0 %v2506
          %2554 = vmatprep.subr.bf16.mxu0 0
          %2555 = vmatpush2.bf16.msra.mxu0 0
          %2556 = vmatprep.subr.bf16.mxu0 0
          %2557 = vmatpush2.bf16.msra.mxu0 0
          %2558 = vmatprep.subr.bf16.mxu0 0
          %2559 = vmatpush2.bf16.msra.mxu0 0
          %2560 = vmatprep.subr.bf16.mxu0 0
          %2561 = vmatpush2.bf16.msra.mxu0 0
          %2562 = vmatprep.subr.bf16.mxu0 0
          %2563 = vmatpush2.bf16.msra.mxu0 0
          %2564 = vmatprep.subr.bf16.mxu0 0
          %2565 = vmatpush2.bf16.msra.mxu0 0
          %2566 = vmatprep.subr.bf16.mxu0 0
          %2567 = vmatpush2.bf16.msra.mxu0 0
          %2568 = vmatprep.subr.bf16.mxu0 0
          %2569 = vmatpush2.bf16.msra.mxu0 0
          %2570 = vmatprep.mubr.bf16.mxu0 0
          %2571 = vmatmul.mubr.bf16.gmra.mxu0 %v2429
          %v2572 = vpop.f32.mrf.mxu0
          %v2573 = vadd.f32 %v2451, %v2572
          %v2574 = vpop.f32.mrf.mxu0
          %v2575 = vadd.f32 %v2455, %v2574
          %v2576 = vpop.f32.mrf.mxu0
          %v2577 = vpop.f32.mrf.mxu0
          %2578 = vdwg.mxu0
          %v2579 = vadd.f32 %v1681, %v1978
          %v2580 = vadd.f32 %v2579, %v2423
          %v2581 = vadd.f32 %v2580, %v2573
          %v2582 = vxor.u32 %v2581, 2147483648
          %v2583 = vmul.f32 %v2582, 1.442695
          %v2584 = vpow.pop %v2583
          %v2585 = vadd.f32 %v2584, 1.0
          %v2586 = vrcp.pop %v2585
          %v2587 = vmul.f32 1.0, %v2586
          %v2588 = vadd.f32 %v2425, %v2575
          %v2589 = vtanh.pop %v2588
          %v2590 = vmul.f32 %v2587, %v2589
          %2591 = vst [vmem:[#allocation26] sm:$0xff] %v2590
          %2592 = vst [vmem:[#allocation27] sm:$0xff] %v2259
          %2593 = vst [vmem:[#allocation29] sm:$0xff] %v2278
        $region140: #{predrnn_cell.1} parent=75 // pred_fallthru
          _
        // Predicated region
        $region141: #{predrnn_cell.1} parent=75 // pred_check
          %p2594 = pneg %p359
        $region142: #{predrnn_cell.1} parent=75 // pred_check_branch
          %2596 = sbr.rel (%p2594) target = $region144
        $region143: #{predrnn_cell.1} parent=75 // pred_region
          %s2598 = ssub.s32 128, 128
          %2599 = vsyncadd [#allocation5], %s2598
          %s2601 = sshll.u32 [#allocation26], 4
          %s2602 = int_to_ptr.vmem [resolvable:$true] %s2601
          %2604 = dma.vmem_to_hbm [thread:$0]  %s2602, 128, %s14, [#allocation5]
        $region144: #{predrnn_cell.1} parent=75 // pred_fallthru
          _
        // Predicated region
        $region145: #{predrnn_cell.1} parent=75 // pred_check
          %p2605 = pneg %p380
        $region146: #{predrnn_cell.1} parent=75 // pred_check_branch
          %2607 = sbr.rel (%p2605) target = $region148
        $region147: #{predrnn_cell.1} parent=75 // pred_region
          %s2609 = ssub.s32 128, 128
          %2610 = vsyncadd [#allocation28], %s2609
          %s2612 = sshll.u32 [#allocation27], 4
          %s2613 = int_to_ptr.vmem [resolvable:$true] %s2612
          %2615 = dma.vmem_to_hbm [thread:$0]  %s2613, 128, %s15, [#allocation28]
        $region148: #{predrnn_cell.1} parent=75 // pred_fallthru
          _
        // Predicated region
        $region149: #{predrnn_cell.1} parent=75 // pred_check
          %p2616 = pneg %p401
        $region150: #{predrnn_cell.1} parent=75 // pred_check_branch
          %2618 = sbr.rel (%p2616) target = $region152
        $region151: #{predrnn_cell.1} parent=75 // pred_region
          %s2620 = ssub.s32 128, 128
          %2621 = vsyncadd [#allocation28], %s2620
          %s2623 = sshll.u32 [#allocation29], 4
          %s2624 = int_to_ptr.vmem [resolvable:$true] %s2623
          %2626 = dma.vmem_to_hbm [thread:$0]  %s2624, 128, %s16, [#allocation28]
        $region152: #{predrnn_cell.1} parent=75 // pred_fallthru
          _
        // Predicated region
        $region153: #{predrnn_cell.1} parent=75 // pred_check
          %p2627 = pneg %p359
        $region154: #{predrnn_cell.1} parent=75 // pred_check_branch
          %2629 = sbr.rel (%p2627) target = $region156
        $region155: #{predrnn_cell.1} parent=75 // pred_region
          %2630 = dma.done [#allocation5], 128
        $region156: #{predrnn_cell.1} parent=75 // pred_fallthru
          _
        // Predicated region
        $region157: #{predrnn_cell.1} parent=75 // pred_check
          %p2631 = pneg %p380
        $region158: #{predrnn_cell.1} parent=75 // pred_check_branch
          %2633 = sbr.rel (%p2631) target = $region160
        $region159: #{predrnn_cell.1} parent=75 // pred_region
          %2634 = dma.done [#allocation28], 128
        $region160: #{predrnn_cell.1} parent=75 // pred_fallthru
          _
        // Predicated region
        $region161: #{predrnn_cell.1} parent=75 // pred_check
          %p2635 = pneg %p401
        $region162: #{predrnn_cell.1} parent=75 // pred_check_branch
          %2637 = sbr.rel (%p2635) target = $region164
        $region163: #{predrnn_cell.1} parent=75 // pred_region
          %2638 = dma.done [#allocation28], 128
        $region164: #{predrnn_cell.1} parent=75 // pred_fallthru
          _
      $region76: #{predrnn_cell.1} parent=5 // pred_fallthru
        _
      %p2639 = scmp.le.s32.totalorder 2, %s37
      // Predicated region
      $region165: #{predrnn_cell.1} parent=5 // pred_check
        %p2640 = pneg %p2639
      $region166: #{predrnn_cell.1} parent=5 // pred_check_branch
        %2642 = sbr.rel (%p2640) target = $region168
      $region167: #{predrnn_cell.1} parent=5 // pred_region
        %s2643 = ssub.s32 %s37, 2
      $region168: #{predrnn_cell.1} parent=5 // pred_fallthru
        _
    $region6: #{predrnn_cell.1} parent=1 // loop_footer
      %s41 = sadd.s32 1, %s37
    $region7: #{predrnn_cell.1} parent=1 // loop_footer_branch
      %36 = sbr.rel target = $region3
    $region8: #{predrnn_cell.1} parent=1 // loop_exit
      _
    %2644 = vsyncpa [#allocation4], 1
    %s2645 = scalar_lea.sflag [#allocation4], 1
    %2646 = vsyncpa %s2645, 1
    %2647 = vsyncpa [#allocation7], 1
    %s2648 = scalar_lea.sflag [#allocation7], 1
    %2649 = vsyncpa %s2648, 1
    %2650 = vsyncpa [#allocation10], 1
    %2651 = vsyncpa [#allocation13], 1
    %2652 = vsyncpa [#allocation16], 1
    %2653 = vsyncpa [#allocation19], 1
    %2654 = vsyncpa [#allocation22], 1
    %2655 = vsyncpa [#allocation25], 1
    %2656 = vsyncpa [#allocation5], 1
    %s2657 = scalar_lea.sflag [#allocation5], 1
    %2658 = vsyncpa %s2657, 1
    %2659 = vsyncpa [#allocation28], 1

</llo_original>
